<compile_context>
chip_gen: v6e
topology: v6e:2x2x1
jax: 0.10.0
libtpu: 0.0.40
codegen_flags: <defaults>
</compile_context>

<pallas_src>
import jax
import jax.numpy as jnp
import numpy as np
from jax.experimental import pallas as pl
from jax.experimental.pallas import tpu as pltpu  # noqa: F401  (kept for TPU backend import)

# ---------------- small, module-consistent configuration ----------------
B = 2                                   # batch_size
L = 8                                   # max_batch_len
W = 4                                   # words per entity mention (words.shape[2]) == LSTM T
WORD_VOCAB = 30
CHAR_VOCAB = 20
WORD_EDIM = 16                          # word_embed_dim
CHAR_EDIM = 8                           # char_embed_dim
CHAR_FEAT = 16                          # char_feature_size
K_CHAR = 3                              # conv_filter_size
MAX_WORD_LEN = 6                        # max_word_len_entity
POOL = MAX_WORD_LEN + K_CHAR - 1        # MaxPool1d kernel/stride = 8
CLEN = W * POOL + K_CHAR - 1            # char sequence length = 34
LC = CLEN - K_CHAR + 1                  # char conv output length = 32 = W*POOL
INPUT_DIM = WORD_EDIM + CHAR_FEAT       # LSTM input_dim = 32
HID = 16                                # hidden_dim == hidden_dim_entity
E_DIM = 32                              # entity_embed_dim
K_ENT = 3                               # entity_conv_filter_size
LO = L - K_ENT + 1                      # per-batch entity conv output length = 6
N = B * L                               # flattened (batch * max_batch_len) = 16
LOF = N - K_ENT + 1                     # flattened-strip conv length = 14
WN = W * N                              # 64


def interleave_gates(wf, wb):
    """Interleave fwd/bwd gate blocks -> columns [i_f i_b | f_f f_b | g_f g_b | o_f o_b]."""
    parts = []
    for g in range(4):
        parts.append(wf[..., g * HID:(g + 1) * HID])
        parts.append(wb[..., g * HID:(g + 1) * HID])
    return jnp.concatenate(parts, axis=-1)


# ---------------- the single fused kernel ----------------
def fused_entity_kernel(xi_ref, wc_ref, bc_ref, wemb_ref,
                        wihf_ref, wihb_ref, whh_ref, bblk_ref,
                        went_ref, bent_ref, mask_ref, o_ref):
    # xi_ref   : (POOL*W*N, K_CHAR*CHAR_EDIM) = (512, 24) im2col char-conv input, row = p*WN + w*N + n
    # wc_ref   : (K_CHAR*CHAR_EDIM, CHAR_FEAT) = (24, 16)
    # bc_ref   : (1, CHAR_FEAT)
    # wemb_ref : (W*N, WORD_EDIM) = (64, 16), row = w*N + n
    # wihf_ref / wihb_ref : (INPUT_DIM, 8*HID) = (32, 128) zero-padded, gate-interleaved
    # whh_ref  : (2*HID, 8*HID) = (32, 128) block-diagonal, gate-interleaved
    # bblk_ref : (1, 8*HID) = (1, 128) fused (b_ih+b_hh) biases for both directions
    # went_ref : (K_ENT, 2*HID, E_DIM) = (3, 32, 32)
    # bent_ref : (1, E_DIM)
    # mask_ref : (LOF, 1) additive mask (0 or -inf) over the flattened conv strip
    # o_ref    : (B, E_DIM) = (2, 32)

    # --- char conv1d as one im2col matmul, MaxPool1d as a static-slice max tree, tanh ---
    acc = jnp.dot(xi_ref[...], wc_ref[...],
                  preferred_element_type=jnp.float32) + bc_ref[...]       # (512, 16)
    chf = acc[0:WN, :]
    for p in range(1, POOL):                                              # pairwise VPU max
        chf = jnp.maximum(chf, acc[p * WN:(p + 1) * WN, :])
    chf = jnp.tanh(chf)                                                   # (W*N, CHAR_FEAT)

    # --- LSTM input; hoist input-to-hidden gates out of the recurrence (batched matmuls) ---
    x_all = jnp.concatenate([wemb_ref[...], chf], axis=-1)                # (W*N, INPUT_DIM)
    gxf = jnp.dot(x_all, wihf_ref[...],
                  preferred_element_type=jnp.float32) + bblk_ref[...]     # (64, 128)
    gxb = jnp.dot(x_all, wihb_ref[...],
                  preferred_element_type=jnp.float32)                     # (64, 128)

    # --- fused fwd+bwd LSTM: h/c as loop-carried vregs, fully unrolled T=4 ---
    h = jnp.zeros((N, 2 * HID), jnp.float32)                              # [h_fwd | h_bwd]
    c = jnp.zeros((N, 2 * HID), jnp.float32)
    whh = whh_ref[...]
    for t in range(W):
        gates = (gxf[t * N:(t + 1) * N, :]
                 + gxb[(W - 1 - t) * N:(W - t) * N, :]
                 + jnp.dot(h, whh, preferred_element_type=jnp.float32))   # (16, 128)
        i = jax.nn.sigmoid(gates[:, 0:2 * HID])
        f = jax.nn.sigmoid(gates[:, 2 * HID:4 * HID])
        g = jnp.tanh(gates[:, 4 * HID:6 * HID])
        o = jax.nn.sigmoid(gates[:, 6 * HID:8 * HID])
        c = f * c + i * g
        h = o * jnp.tanh(c)                                               # (16, 32)

    # --- entity conv1d over the flattened (B*L) strip + mask(-inf) + per-batch global max ---
    acc_e = jnp.zeros((LOF, E_DIM), jnp.float32) + bent_ref[...]          # (14, 32)
    for j in range(K_ENT):
        acc_e = acc_e + jnp.dot(h[j:j + LOF, :], went_ref[j],
                                preferred_element_type=jnp.float32)
    acc_e = acc_e + mask_ref[...]                                         # additive -inf mask
    outs = [jnp.max(acc_e[b * L:b * L + LO, :], axis=0, keepdims=True) for b in range(B)]
    o_ref[...] = jnp.concatenate(outs, axis=0)                            # single (2, 32) store


_fused_call = pl.pallas_call(
    fused_entity_kernel,
    out_shape=jax.ShapeDtypeStruct((B, E_DIM), jnp.float32),
)


# ---------------- full forward (embedding gathers & weight repacking are plain-JAX glue) ----------------
@jax.jit
def entity_embedding_forward(words, chars, conv_mask, P):
    # TODO(synk): nn.Dropout is identity in eval mode; not implemented in-kernel.
    words_f = words.reshape(N, W)
    chars_f = chars.reshape(N, CLEN)
    wemb = jnp.take(P['word_emb'], words_f, axis=0)                      # (N, W, WORD_EDIM)
    cemb = jnp.take(P['char_emb'], chars_f, axis=0)                      # (N, CLEN, CHAR_EDIM)

    # char-conv im2col; rows ordered (pool_pos, word, n) so the in-kernel pool is slice-aligned
    taps = jnp.concatenate([cemb[:, j:j + LC, :] for j in range(K_CHAR)], axis=-1)  # (N, LC, 24)
    x_im2col = jnp.transpose(taps.reshape(N, W, POOL, K_CHAR * CHAR_EDIM),
                             (2, 1, 0, 3)).reshape(POOL * WN, K_CHAR * CHAR_EDIM)   # (512, 24)
    w_char_flat = P['w_char_k'].reshape(K_CHAR * CHAR_EDIM, CHAR_FEAT)              # (24, 16)

    # word embeddings, time-major rows (w, n) to match the char-feature ordering
    wemb_t = jnp.transpose(wemb, (1, 0, 2)).reshape(WN, WORD_EDIM)                  # (64, 16)

    # gate-interleaved, zero-padded bidirectional LSTM weights (128-lane-wide gate matmuls)
    z_ih = jnp.zeros_like(P['wih_f'])
    z_hh = jnp.zeros_like(P['whh_f'])
    wih_f_pad = interleave_gates(P['wih_f'], z_ih)                                  # (32, 128)
    wih_b_pad = interleave_gates(z_ih, P['wih_b'])                                  # (32, 128)
    whh_blk = jnp.concatenate([interleave_gates(P['whh_f'], z_hh),
                               interleave_gates(z_hh, P['whh_b'])], axis=0)         # (32, 128)
    b_blk = interleave_gates(P['b_f'], P['b_b'])                                    # (1, 128)

    # entity conv mask -> additive -inf mask over the flattened (B*L) strip
    neg = jnp.where(conv_mask > 0, -jnp.inf, 0.0).astype(jnp.float32)               # (B, LO)
    strip_mask = jnp.pad(neg, ((0, 0), (0, L - LO))).reshape(B * L, 1)[:LOF]        # (14, 1)

    return _fused_call(x_im2col, w_char_flat, P['b_char'], wemb_t,
                       wih_f_pad, wih_b_pad, whh_blk, b_blk,
                       P['w_ent_k'], P['b_ent'], strip_mask)                        # (B, E_DIM)


# ---------------- pure-JAX reference for verification ----------------
def reference_forward(words, chars, conv_mask, P):
    words_f = words.reshape(N, W)
    chars_f = chars.reshape(N, CLEN)
    wemb = P['word_emb'][words_f]
    cemb = P['char_emb'][chars_f]
    conv = jnp.zeros((N, LC, CHAR_FEAT), jnp.float32)
    for j in range(K_CHAR):
        conv = conv + jnp.einsum('nlc,cf->nlf', cemb[:, j:j + LC, :], P['w_char_k'][j])
    conv = conv + P['b_char']
    feat = jnp.tanh(jnp.max(conv.reshape(N, W, POOL, CHAR_FEAT), axis=2))
    x = jnp.concatenate([wemb, feat], axis=-1)

    def lstm_dir(wih, whh, b, reverse):
        h = jnp.zeros((N, HID), jnp.float32)
        c = jnp.zeros((N, HID), jnp.float32)
        ts = list(range(W))
        if reverse:
            ts = ts[::-1]
        for t in ts:
            gates = x[:, t, :] @ wih + h @ whh + b
            i = jax.nn.sigmoid(gates[:, :HID])
            f = jax.nn.sigmoid(gates[:, HID:2 * HID])
            g = jnp.tanh(gates[:, 2 * HID:3 * HID])
            o = jax.nn.sigmoid(gates[:, 3 * HID:])
            c = f * c + i * g
            h = o * jnp.tanh(c)
        return h

    hf = lstm_dir(P['wih_f'], P['whh_f'], P['b_f'], False)
    hb = lstm_dir(P['wih_b'], P['whh_b'], P['b_b'], True)
    hcat = jnp.concatenate([hf, hb], axis=1).reshape(B, L, 2 * HID)
    conv_e = jnp.zeros((B, LO, E_DIM), jnp.float32)
    for j in range(K_ENT):
        conv_e = conv_e + jnp.einsum('blc,ce->ble', hcat[:, j:j + LO, :], P['w_ent_k'][j])
    conv_e = conv_e + P['b_ent']
    conv_e = jnp.where(conv_mask[:, :, None] > 0, -jnp.inf, conv_e)
    return jnp.max(conv_e, axis=1)


# ---------------- deterministic parameters & example inputs ----------------
def make_params(key):
    ks = jax.random.split(key, 12)
    s = 0.1
    word_emb = jax.random.normal(ks[0], (WORD_VOCAB, WORD_EDIM), jnp.float32) * s
    word_emb = word_emb.at[0].set(0.0)                       # padding_idx=0
    char_emb = jax.random.normal(ks[1], (CHAR_VOCAB, CHAR_EDIM), jnp.float32) * s
    char_emb = char_emb.at[0].set(0.0)                       # padding_idx=0
    # torch Conv1d weight (out, in, k) -> kernel layout (k, in, out)
    w_char = jax.random.normal(ks[2], (CHAR_FEAT, CHAR_EDIM, K_CHAR), jnp.float32) * s
    w_char_k = jnp.transpose(w_char, (2, 1, 0))
    b_char = jax.random.normal(ks[3], (1, CHAR_FEAT), jnp.float32) * s
    # torch LSTM weight_ih (4H, D) / weight_hh (4H, H) -> transposed layouts, b = b_ih + b_hh
    wih_f = jax.random.normal(ks[4], (INPUT_DIM, 4 * HID), jnp.float32) * s
    whh_f = jax.random.normal(ks[5], (HID, 4 * HID), jnp.float32) * s
    b_f = jax.random.normal(ks[6], (1, 4 * HID), jnp.float32) * s
    wih_b = jax.random.normal(ks[7], (INPUT_DIM, 4 * HID), jnp.float32) * s
    whh_b = jax.random.normal(ks[8], (HID, 4 * HID), jnp.float32) * s
    b_b = jax.random.normal(ks[9], (1, 4 * HID), jnp.float32) * s
    w_ent = jax.random.normal(ks[10], (E_DIM, 2 * HID, K_ENT), jnp.float32) * s
    w_ent_k = jnp.transpose(w_ent, (2, 1, 0))
    b_ent = jax.random.normal(ks[11], (1, E_DIM), jnp.float32) * s
    return dict(word_emb=word_emb, char_emb=char_emb,
                w_char_k=w_char_k, b_char=b_char,
                wih_f=wih_f, whh_f=whh_f, b_f=b_f,
                wih_b=wih_b, whh_b=whh_b, b_b=b_b,
                w_ent_k=w_ent_k, b_ent=b_ent)


if __name__ == "__main__":
    key = jax.random.PRNGKey(0)
    kp, kw, kc = jax.random.split(key, 3)
    P = make_params(kp)

    words = jax.random.randint(kw, (B, L, W), 1, WORD_VOCAB, dtype=jnp.int32)
    chars = jax.random.randint(kc, (B, L, CLEN), 1, CHAR_VOCAB, dtype=jnp.int32)
    valid_len = jnp.array([4, 6], dtype=jnp.int32)                   # per-batch valid conv length
    conv_mask = (jnp.arange(LO)[None, :] >= valid_len[:, None]).astype(jnp.float32)  # (B, LO)

    out = jax.block_until_ready(entity_embedding_forward(words, chars, conv_mask, P))
    assert out.shape == (B, E_DIM), out.shape

    ref = reference_forward(words, chars, conv_mask, P)
    np.testing.assert_allclose(np.asarray(out), np.asarray(ref), rtol=1e-4, atol=1e-4)

    print("KERNEL_OK")
</pallas_src>

<mosaic_0001>
module attributes {stable_mosaic.version = 11 : i64} {
  func.func @fused_entity_kernel(%arg0: memref<512x24xf32, #tpu.memory_space<vmem>>, %arg1: memref<24x16xf32, #tpu.memory_space<vmem>>, %arg2: memref<1x16xf32, #tpu.memory_space<vmem>>, %arg3: memref<64x16xf32, #tpu.memory_space<vmem>>, %arg4: memref<32x128xf32, #tpu.memory_space<vmem>>, %arg5: memref<32x128xf32, #tpu.memory_space<vmem>>, %arg6: memref<32x128xf32, #tpu.memory_space<vmem>>, %arg7: memref<1x128xf32, #tpu.memory_space<vmem>>, %arg8: memref<3x32x32xf32, #tpu.memory_space<vmem>>, %arg9: memref<1x32xf32, #tpu.memory_space<vmem>>, %arg10: memref<14x1xf32, #tpu.memory_space<vmem>>, %arg11: memref<2x32xf32, #tpu.memory_space<vmem>>) attributes {dimension_semantics = [], scalar_prefetch = 0 : i64, scratch_operands = 0 : i64, tpu.core_type = #tpu.core_type<tc>} {
    %c0 = arith.constant 0 : index
    %c0_0 = arith.constant 0 : index
    %0 = vector.load %arg0[%c0, %c0_0] : memref<512x24xf32, #tpu.memory_space<vmem>>, vector<512x24xf32>
    %c0_1 = arith.constant 0 : index
    %c0_2 = arith.constant 0 : index
    %1 = vector.load %arg1[%c0_1, %c0_2] : memref<24x16xf32, #tpu.memory_space<vmem>>, vector<24x16xf32>
    %cst = arith.constant dense<0.000000e+00> : vector<512x16xf32>
    %2 = tpu.matmul %0, %1, %cst {dimension_numbers = #tpu.dot_dimension_numbers<[1], [0], [0], [1], [0, 0, 1, 1], [], []>} : vector<512x24xf32>, vector<24x16xf32>, vector<512x16xf32> -> vector<512x16xf32>
    %c0_3 = arith.constant 0 : index
    %c0_4 = arith.constant 0 : index
    %3 = vector.load %arg2[%c0_3, %c0_4] : memref<1x16xf32, #tpu.memory_space<vmem>>, vector<1x16xf32>
    %4 = vector.broadcast %3 : vector<1x16xf32> to vector<512x16xf32>
    %5 = arith.addf %2, %4 : vector<512x16xf32>
    %6 = vector.extract_strided_slice %5 {offsets = [0, 0], sizes = [64, 16], strides = [1, 1]} : vector<512x16xf32> to vector<64x16xf32>
    %7 = vector.extract_strided_slice %5 {offsets = [64, 0], sizes = [64, 16], strides = [1, 1]} : vector<512x16xf32> to vector<64x16xf32>
    %8 = arith.maximumf %6, %7 : vector<64x16xf32>
    %9 = vector.extract_strided_slice %5 {offsets = [128, 0], sizes = [64, 16], strides = [1, 1]} : vector<512x16xf32> to vector<64x16xf32>
    %10 = arith.maximumf %8, %9 : vector<64x16xf32>
    %11 = vector.extract_strided_slice %5 {offsets = [192, 0], sizes = [64, 16], strides = [1, 1]} : vector<512x16xf32> to vector<64x16xf32>
    %12 = arith.maximumf %10, %11 : vector<64x16xf32>
    %13 = vector.extract_strided_slice %5 {offsets = [256, 0], sizes = [64, 16], strides = [1, 1]} : vector<512x16xf32> to vector<64x16xf32>
    %14 = arith.maximumf %12, %13 : vector<64x16xf32>
    %15 = vector.extract_strided_slice %5 {offsets = [320, 0], sizes = [64, 16], strides = [1, 1]} : vector<512x16xf32> to vector<64x16xf32>
    %16 = arith.maximumf %14, %15 : vector<64x16xf32>
    %17 = vector.extract_strided_slice %5 {offsets = [384, 0], sizes = [64, 16], strides = [1, 1]} : vector<512x16xf32> to vector<64x16xf32>
    %18 = arith.maximumf %16, %17 : vector<64x16xf32>
    %19 = vector.extract_strided_slice %5 {offsets = [448, 0], sizes = [64, 16], strides = [1, 1]} : vector<512x16xf32> to vector<64x16xf32>
    %20 = arith.maximumf %18, %19 : vector<64x16xf32>
    %21 = math.tanh %20 : vector<64x16xf32>
    %c0_5 = arith.constant 0 : index
    %c0_6 = arith.constant 0 : index
    %22 = vector.load %arg3[%c0_5, %c0_6] : memref<64x16xf32, #tpu.memory_space<vmem>>, vector<64x16xf32>
    %23 = tpu.concatenate %22, %21 in 1 : vector<64x16xf32>, vector<64x16xf32> -> vector<64x32xf32>
    %c0_7 = arith.constant 0 : index
    %c0_8 = arith.constant 0 : index
    %24 = vector.load %arg4[%c0_7, %c0_8] : memref<32x128xf32, #tpu.memory_space<vmem>>, vector<32x128xf32>
    %cst_9 = arith.constant dense<0.000000e+00> : vector<64x128xf32>
    %25 = tpu.matmul %23, %24, %cst_9 {dimension_numbers = #tpu.dot_dimension_numbers<[1], [0], [0], [1], [0, 0, 1, 1], [], []>} : vector<64x32xf32>, vector<32x128xf32>, vector<64x128xf32> -> vector<64x128xf32>
    %c0_10 = arith.constant 0 : index
    %c0_11 = arith.constant 0 : index
    %26 = vector.load %arg7[%c0_10, %c0_11] : memref<1x128xf32, #tpu.memory_space<vmem>>, vector<1x128xf32>
    %27 = vector.broadcast %26 : vector<1x128xf32> to vector<64x128xf32>
    %28 = arith.addf %25, %27 : vector<64x128xf32>
    %c0_12 = arith.constant 0 : index
    %c0_13 = arith.constant 0 : index
    %29 = vector.load %arg5[%c0_12, %c0_13] : memref<32x128xf32, #tpu.memory_space<vmem>>, vector<32x128xf32>
    %cst_14 = arith.constant dense<0.000000e+00> : vector<64x128xf32>
    %30 = tpu.matmul %23, %29, %cst_14 {dimension_numbers = #tpu.dot_dimension_numbers<[1], [0], [0], [1], [0, 0, 1, 1], [], []>} : vector<64x32xf32>, vector<32x128xf32>, vector<64x128xf32> -> vector<64x128xf32>
    %cst_15 = arith.constant 0.000000e+00 : f32
    %31 = vector.broadcast %cst_15 : f32 to vector<16x32xf32>
    %cst_16 = arith.constant 0.000000e+00 : f32
    %32 = vector.broadcast %cst_16 : f32 to vector<16x32xf32>
    %c0_17 = arith.constant 0 : index
    %c0_18 = arith.constant 0 : index
    %33 = vector.load %arg6[%c0_17, %c0_18] : memref<32x128xf32, #tpu.memory_space<vmem>>, vector<32x128xf32>
    %34 = vector.extract_strided_slice %28 {offsets = [0, 0], sizes = [16, 128], strides = [1, 1]} : vector<64x128xf32> to vector<16x128xf32>
    %35 = vector.extract_strided_slice %30 {offsets = [48, 0], sizes = [16, 128], strides = [1, 1]} : vector<64x128xf32> to vector<16x128xf32>
    %36 = arith.addf %34, %35 : vector<16x128xf32>
    %cst_19 = arith.constant dense<0.000000e+00> : vector<16x128xf32>
    %37 = tpu.matmul %31, %33, %cst_19 {dimension_numbers = #tpu.dot_dimension_numbers<[1], [0], [0], [1], [0, 0, 1, 1], [], []>} : vector<16x32xf32>, vector<32x128xf32>, vector<16x128xf32> -> vector<16x128xf32>
    %38 = arith.addf %36, %37 : vector<16x128xf32>
    %39 = vector.extract_strided_slice %38 {offsets = [0, 0], sizes = [16, 32], strides = [1, 1]} : vector<16x128xf32> to vector<16x32xf32>
    %40 = arith.negf %39 : vector<16x32xf32>
    %41 = math.exp %40 : vector<16x32xf32>
    %cst_20 = arith.constant 1.000000e+00 : f32
    %42 = vector.broadcast %cst_20 : f32 to vector<16x32xf32>
    %43 = arith.addf %42, %41 : vector<16x32xf32>
    %44 = arith.divf %42, %43 : vector<16x32xf32>
    %45 = vector.extract_strided_slice %38 {offsets = [0, 32], sizes = [16, 32], strides = [1, 1]} : vector<16x128xf32> to vector<16x32xf32>
    %46 = arith.negf %45 : vector<16x32xf32>
    %47 = math.exp %46 : vector<16x32xf32>
    %cst_21 = arith.constant 1.000000e+00 : f32
    %48 = vector.broadcast %cst_21 : f32 to vector<16x32xf32>
    %49 = arith.addf %48, %47 : vector<16x32xf32>
    %50 = arith.divf %48, %49 : vector<16x32xf32>
    %51 = vector.extract_strided_slice %38 {offsets = [0, 64], sizes = [16, 32], strides = [1, 1]} : vector<16x128xf32> to vector<16x32xf32>
    %52 = math.tanh %51 : vector<16x32xf32>
    %53 = vector.extract_strided_slice %38 {offsets = [0, 96], sizes = [16, 32], strides = [1, 1]} : vector<16x128xf32> to vector<16x32xf32>
    %54 = arith.negf %53 : vector<16x32xf32>
    %55 = math.exp %54 : vector<16x32xf32>
    %cst_22 = arith.constant 1.000000e+00 : f32
    %56 = vector.broadcast %cst_22 : f32 to vector<16x32xf32>
    %57 = arith.addf %56, %55 : vector<16x32xf32>
    %58 = arith.divf %56, %57 : vector<16x32xf32>
    %59 = arith.mulf %50, %32 : vector<16x32xf32>
    %60 = arith.mulf %44, %52 : vector<16x32xf32>
    %61 = arith.addf %59, %60 : vector<16x32xf32>
    %62 = math.tanh %61 : vector<16x32xf32>
    %63 = arith.mulf %58, %62 : vector<16x32xf32>
    %64 = vector.extract_strided_slice %28 {offsets = [16, 0], sizes = [16, 128], strides = [1, 1]} : vector<64x128xf32> to vector<16x128xf32>
    %65 = vector.extract_strided_slice %30 {offsets = [32, 0], sizes = [16, 128], strides = [1, 1]} : vector<64x128xf32> to vector<16x128xf32>
    %66 = arith.addf %64, %65 : vector<16x128xf32>
    %cst_23 = arith.constant dense<0.000000e+00> : vector<16x128xf32>
    %67 = tpu.matmul %63, %33, %cst_23 {dimension_numbers = #tpu.dot_dimension_numbers<[1], [0], [0], [1], [0, 0, 1, 1], [], []>} : vector<16x32xf32>, vector<32x128xf32>, vector<16x128xf32> -> vector<16x128xf32>
    %68 = arith.addf %66, %67 : vector<16x128xf32>
    %69 = vector.extract_strided_slice %68 {offsets = [0, 0], sizes = [16, 32], strides = [1, 1]} : vector<16x128xf32> to vector<16x32xf32>
    %70 = arith.negf %69 : vector<16x32xf32>
    %71 = math.exp %70 : vector<16x32xf32>
    %cst_24 = arith.constant 1.000000e+00 : f32
    %72 = vector.broadcast %cst_24 : f32 to vector<16x32xf32>
    %73 = arith.addf %72, %71 : vector<16x32xf32>
    %74 = arith.divf %72, %73 : vector<16x32xf32>
    %75 = vector.extract_strided_slice %68 {offsets = [0, 32], sizes = [16, 32], strides = [1, 1]} : vector<16x128xf32> to vector<16x32xf32>
    %76 = arith.negf %75 : vector<16x32xf32>
    %77 = math.exp %76 : vector<16x32xf32>
    %cst_25 = arith.constant 1.000000e+00 : f32
    %78 = vector.broadcast %cst_25 : f32 to vector<16x32xf32>
    %79 = arith.addf %78, %77 : vector<16x32xf32>
    %80 = arith.divf %78, %79 : vector<16x32xf32>
    %81 = vector.extract_strided_slice %68 {offsets = [0, 64], sizes = [16, 32], strides = [1, 1]} : vector<16x128xf32> to vector<16x32xf32>
    %82 = math.tanh %81 : vector<16x32xf32>
    %83 = vector.extract_strided_slice %68 {offsets = [0, 96], sizes = [16, 32], strides = [1, 1]} : vector<16x128xf32> to vector<16x32xf32>
    %84 = arith.negf %83 : vector<16x32xf32>
    %85 = math.exp %84 : vector<16x32xf32>
    %cst_26 = arith.constant 1.000000e+00 : f32
    %86 = vector.broadcast %cst_26 : f32 to vector<16x32xf32>
    %87 = arith.addf %86, %85 : vector<16x32xf32>
    %88 = arith.divf %86, %87 : vector<16x32xf32>
    %89 = arith.mulf %80, %61 : vector<16x32xf32>
    %90 = arith.mulf %74, %82 : vector<16x32xf32>
    %91 = arith.addf %89, %90 : vector<16x32xf32>
    %92 = math.tanh %91 : vector<16x32xf32>
    %93 = arith.mulf %88, %92 : vector<16x32xf32>
    %94 = vector.extract_strided_slice %28 {offsets = [32, 0], sizes = [16, 128], strides = [1, 1]} : vector<64x128xf32> to vector<16x128xf32>
    %95 = vector.extract_strided_slice %30 {offsets = [16, 0], sizes = [16, 128], strides = [1, 1]} : vector<64x128xf32> to vector<16x128xf32>
    %96 = arith.addf %94, %95 : vector<16x128xf32>
    %cst_27 = arith.constant dense<0.000000e+00> : vector<16x128xf32>
    %97 = tpu.matmul %93, %33, %cst_27 {dimension_numbers = #tpu.dot_dimension_numbers<[1], [0], [0], [1], [0, 0, 1, 1], [], []>} : vector<16x32xf32>, vector<32x128xf32>, vector<16x128xf32> -> vector<16x128xf32>
    %98 = arith.addf %96, %97 : vector<16x128xf32>
    %99 = vector.extract_strided_slice %98 {offsets = [0, 0], sizes = [16, 32], strides = [1, 1]} : vector<16x128xf32> to vector<16x32xf32>
    %100 = arith.negf %99 : vector<16x32xf32>
    %101 = math.exp %100 : vector<16x32xf32>
    %cst_28 = arith.constant 1.000000e+00 : f32
    %102 = vector.broadcast %cst_28 : f32 to vector<16x32xf32>
    %103 = arith.addf %102, %101 : vector<16x32xf32>
    %104 = arith.divf %102, %103 : vector<16x32xf32>
    %105 = vector.extract_strided_slice %98 {offsets = [0, 32], sizes = [16, 32], strides = [1, 1]} : vector<16x128xf32> to vector<16x32xf32>
    %106 = arith.negf %105 : vector<16x32xf32>
    %107 = math.exp %106 : vector<16x32xf32>
    %cst_29 = arith.constant 1.000000e+00 : f32
    %108 = vector.broadcast %cst_29 : f32 to vector<16x32xf32>
    %109 = arith.addf %108, %107 : vector<16x32xf32>
    %110 = arith.divf %108, %109 : vector<16x32xf32>
    %111 = vector.extract_strided_slice %98 {offsets = [0, 64], sizes = [16, 32], strides = [1, 1]} : vector<16x128xf32> to vector<16x32xf32>
    %112 = math.tanh %111 : vector<16x32xf32>
    %113 = vector.extract_strided_slice %98 {offsets = [0, 96], sizes = [16, 32], strides = [1, 1]} : vector<16x128xf32> to vector<16x32xf32>
    %114 = arith.negf %113 : vector<16x32xf32>
    %115 = math.exp %114 : vector<16x32xf32>
    %cst_30 = arith.constant 1.000000e+00 : f32
    %116 = vector.broadcast %cst_30 : f32 to vector<16x32xf32>
    %117 = arith.addf %116, %115 : vector<16x32xf32>
    %118 = arith.divf %116, %117 : vector<16x32xf32>
    %119 = arith.mulf %110, %91 : vector<16x32xf32>
    %120 = arith.mulf %104, %112 : vector<16x32xf32>
    %121 = arith.addf %119, %120 : vector<16x32xf32>
    %122 = math.tanh %121 : vector<16x32xf32>
    %123 = arith.mulf %118, %122 : vector<16x32xf32>
    %124 = vector.extract_strided_slice %28 {offsets = [48, 0], sizes = [16, 128], strides = [1, 1]} : vector<64x128xf32> to vector<16x128xf32>
    %125 = vector.extract_strided_slice %30 {offsets = [0, 0], sizes = [16, 128], strides = [1, 1]} : vector<64x128xf32> to vector<16x128xf32>
    %126 = arith.addf %124, %125 : vector<16x128xf32>
    %cst_31 = arith.constant dense<0.000000e+00> : vector<16x128xf32>
    %127 = tpu.matmul %123, %33, %cst_31 {dimension_numbers = #tpu.dot_dimension_numbers<[1], [0], [0], [1], [0, 0, 1, 1], [], []>} : vector<16x32xf32>, vector<32x128xf32>, vector<16x128xf32> -> vector<16x128xf32>
    %128 = arith.addf %126, %127 : vector<16x128xf32>
    %129 = vector.extract_strided_slice %128 {offsets = [0, 0], sizes = [16, 32], strides = [1, 1]} : vector<16x128xf32> to vector<16x32xf32>
    %130 = arith.negf %129 : vector<16x32xf32>
    %131 = math.exp %130 : vector<16x32xf32>
    %cst_32 = arith.constant 1.000000e+00 : f32
    %132 = vector.broadcast %cst_32 : f32 to vector<16x32xf32>
    %133 = arith.addf %132, %131 : vector<16x32xf32>
    %134 = arith.divf %132, %133 : vector<16x32xf32>
    %135 = vector.extract_strided_slice %128 {offsets = [0, 32], sizes = [16, 32], strides = [1, 1]} : vector<16x128xf32> to vector<16x32xf32>
    %136 = arith.negf %135 : vector<16x32xf32>
    %137 = math.exp %136 : vector<16x32xf32>
    %cst_33 = arith.constant 1.000000e+00 : f32
    %138 = vector.broadcast %cst_33 : f32 to vector<16x32xf32>
    %139 = arith.addf %138, %137 : vector<16x32xf32>
    %140 = arith.divf %138, %139 : vector<16x32xf32>
    %141 = vector.extract_strided_slice %128 {offsets = [0, 64], sizes = [16, 32], strides = [1, 1]} : vector<16x128xf32> to vector<16x32xf32>
    %142 = math.tanh %141 : vector<16x32xf32>
    %143 = vector.extract_strided_slice %128 {offsets = [0, 96], sizes = [16, 32], strides = [1, 1]} : vector<16x128xf32> to vector<16x32xf32>
    %144 = arith.negf %143 : vector<16x32xf32>
    %145 = math.exp %144 : vector<16x32xf32>
    %cst_34 = arith.constant 1.000000e+00 : f32
    %146 = vector.broadcast %cst_34 : f32 to vector<16x32xf32>
    %147 = arith.addf %146, %145 : vector<16x32xf32>
    %148 = arith.divf %146, %147 : vector<16x32xf32>
    %149 = arith.mulf %140, %121 : vector<16x32xf32>
    %150 = arith.mulf %134, %142 : vector<16x32xf32>
    %151 = arith.addf %149, %150 : vector<16x32xf32>
    %152 = math.tanh %151 : vector<16x32xf32>
    %153 = arith.mulf %148, %152 : vector<16x32xf32>
    %cst_35 = arith.constant 0.000000e+00 : f32
    %154 = vector.broadcast %cst_35 : f32 to vector<14x32xf32>
    %c0_36 = arith.constant 0 : index
    %c0_37 = arith.constant 0 : index
    %155 = vector.load %arg9[%c0_36, %c0_37] : memref<1x32xf32, #tpu.memory_space<vmem>>, vector<1x32xf32>
    %156 = vector.broadcast %155 : vector<1x32xf32> to vector<14x32xf32>
    %157 = arith.addf %154, %156 : vector<14x32xf32>
    %158 = vector.extract_strided_slice %153 {offsets = [0, 0], sizes = [14, 32], strides = [1, 1]} : vector<16x32xf32> to vector<14x32xf32>
    %c0_38 = arith.constant 0 : index
    %c0_39 = arith.constant 0 : index
    %c0_40 = arith.constant 0 : index
    %159 = vector.load %arg8[%c0_38, %c0_39, %c0_40] : memref<3x32x32xf32, #tpu.memory_space<vmem>>, vector<1x32x32xf32>
    %160 = vector.shape_cast %159 : vector<1x32x32xf32> to vector<32x32xf32>
    %cst_41 = arith.constant dense<0.000000e+00> : vector<14x32xf32>
    %161 = tpu.matmul %158, %160, %cst_41 {dimension_numbers = #tpu.dot_dimension_numbers<[1], [0], [0], [1], [0, 0, 1, 1], [], []>} : vector<14x32xf32>, vector<32x32xf32>, vector<14x32xf32> -> vector<14x32xf32>
    %162 = arith.addf %157, %161 : vector<14x32xf32>
    %163 = vector.extract_strided_slice %153 {offsets = [1, 0], sizes = [14, 32], strides = [1, 1]} : vector<16x32xf32> to vector<14x32xf32>
    %c1 = arith.constant 1 : index
    %c0_42 = arith.constant 0 : index
    %c0_43 = arith.constant 0 : index
    %164 = vector.load %arg8[%c1, %c0_42, %c0_43] : memref<3x32x32xf32, #tpu.memory_space<vmem>>, vector<1x32x32xf32>
    %165 = vector.shape_cast %164 : vector<1x32x32xf32> to vector<32x32xf32>
    %cst_44 = arith.constant dense<0.000000e+00> : vector<14x32xf32>
    %166 = tpu.matmul %163, %165, %cst_44 {dimension_numbers = #tpu.dot_dimension_numbers<[1], [0], [0], [1], [0, 0, 1, 1], [], []>} : vector<14x32xf32>, vector<32x32xf32>, vector<14x32xf32> -> vector<14x32xf32>
    %167 = arith.addf %162, %166 : vector<14x32xf32>
    %168 = vector.extract_strided_slice %153 {offsets = [2, 0], sizes = [14, 32], strides = [1, 1]} : vector<16x32xf32> to vector<14x32xf32>
    %c2 = arith.constant 2 : index
    %c0_45 = arith.constant 0 : index
    %c0_46 = arith.constant 0 : index
    %169 = vector.load %arg8[%c2, %c0_45, %c0_46] : memref<3x32x32xf32, #tpu.memory_space<vmem>>, vector<1x32x32xf32>
    %170 = vector.shape_cast %169 : vector<1x32x32xf32> to vector<32x32xf32>
    %cst_47 = arith.constant dense<0.000000e+00> : vector<14x32xf32>
    %171 = tpu.matmul %168, %170, %cst_47 {dimension_numbers = #tpu.dot_dimension_numbers<[1], [0], [0], [1], [0, 0, 1, 1], [], []>} : vector<14x32xf32>, vector<32x32xf32>, vector<14x32xf32> -> vector<14x32xf32>
    %172 = arith.addf %167, %171 : vector<14x32xf32>
    %c0_48 = arith.constant 0 : index
    %c0_49 = arith.constant 0 : index
    %173 = vector.load %arg10[%c0_48, %c0_49] : memref<14x1xf32, #tpu.memory_space<vmem>>, vector<14x1xf32>
    %174 = vector.broadcast %173 : vector<14x1xf32> to vector<14x32xf32>
    %175 = arith.addf %172, %174 : vector<14x32xf32>
    %176 = vector.extract_strided_slice %175 {offsets = [0, 0], sizes = [6, 32], strides = [1, 1]} : vector<14x32xf32> to vector<6x32xf32>
    %cst_50 = arith.constant dense<0xFF800000> : vector<32xf32>
    %177 = vector.multi_reduction <maximumf>, %176, %cst_50 [0] : vector<6x32xf32> to vector<32xf32>
    %178 = vector.shape_cast %177 : vector<32xf32> to vector<1x32xf32>
    %179 = vector.extract_strided_slice %175 {offsets = [8, 0], sizes = [6, 32], strides = [1, 1]} : vector<14x32xf32> to vector<6x32xf32>
    %cst_51 = arith.constant dense<0xFF800000> : vector<32xf32>
    %180 = vector.multi_reduction <maximumf>, %179, %cst_51 [0] : vector<6x32xf32> to vector<32xf32>
    %181 = vector.shape_cast %180 : vector<32xf32> to vector<1x32xf32>
    %182 = tpu.concatenate %178, %181 in 0 : vector<1x32xf32>, vector<1x32xf32> -> vector<2x32xf32>
    %c0_52 = arith.constant 0 : index
    %c0_53 = arith.constant 0 : index
    %183 = vector.load %arg11[%c0_52, %c0_53] : memref<2x32xf32, #tpu.memory_space<vmem>>, vector<2x32xf32>
    tpu.vector_store %arg11[%c0_52, %c0_53], %182 {strides = array<i32>} : memref<2x32xf32, #tpu.memory_space<vmem>>, vector<2x32xf32>,
    return
  }
}

</mosaic_0001>

<llo_original>
// kernel: entity_embedding_forward.1
$region0: #{entity_embedding_forward.1}
  #allocation0 [shape = 'u32[]', space=smem, size = 0x4, offset = 0x4, fixed_abs, tag = 'smem constant byte address 0x4 - core index']
  #allocation1 [shape = 'u32[144,128]{1,0:T(1,128)}', space=vmem, size = 0x12000, scoped, tag = 'internal scratch']
  %s0 = inlined_call_operand.vmem [shape: f32[512,24], index: 0, kind: input, shape index: {}]
  %s1 = inlined_call_operand.vmem [shape: f32[24,16], index: 1, kind: input, shape index: {}]
  %s2 = inlined_call_operand.vmem [shape: f32[1,16], index: 2, kind: input, shape index: {}]
  %s3 = inlined_call_operand.vmem [shape: f32[64,16], index: 3, kind: input, shape index: {}]
  %s4 = inlined_call_operand.vmem [shape: f32[32,128], index: 4, kind: input, shape index: {}]
  %s5 = inlined_call_operand.vmem [shape: f32[32,128], index: 5, kind: input, shape index: {}]
  %s6 = inlined_call_operand.vmem [shape: f32[32,128], index: 6, kind: input, shape index: {}]
  %s7 = inlined_call_operand.vmem [shape: f32[1,128], index: 7, kind: input, shape index: {}]
  %s8 = inlined_call_operand.vmem [shape: f32[3,32,32], index: 8, kind: input, shape index: {}]
  %s9 = inlined_call_operand.vmem [shape: f32[1,32], index: 9, kind: input, shape index: {}]
  %s10 = inlined_call_operand.vmem [shape: f32[14,1], index: 10, kind: input, shape index: {}]
  %s11 = inlined_call_operand.hbm [shape: f32[2,32], index: 11, kind: output, shape index: {}]
  %s12 = sld [smem:[#allocation0]]
  $region54: #{entity_embedding_forward.1} parent=0
    _
  %s14 = ssub.s32 1, %s12
  %s15 = scalar_select 0, %s14, %s12
  $region1: #{entity_embedding_forward.1} parent=0
    #allocation2 [shape = 'u8[1024]{0}', space=vmem, size = 0x400, scoped, tag = 'output window, operand 0, single buffered']
    #allocation3 [shape = 's32[1]{0}', space=sflag, size = 0x4, scoped, tag = 'scoped memory for entity_embedding_forward.1']
    %16 = vsyncpa [#allocation3], 0
    // Predicated region
    $region2: #{entity_embedding_forward.1} parent=1 // pred_check
      _
    $region3: #{entity_embedding_forward.1} parent=1 // pred_check_branch
      %18 = sbr.rel (0) target = $region5
    $region4: #{entity_embedding_forward.1} parent=1 // pred_region
      _
    $region5: #{entity_embedding_forward.1} parent=1 // pred_fallthru
      _
    // Predicated region
    $region6: #{entity_embedding_forward.1} parent=1 // pred_check
      _
    $region7: #{entity_embedding_forward.1} parent=1 // pred_check_branch
      %20 = sbr.rel (0) target = $region9
    $region8: #{entity_embedding_forward.1} parent=1 // pred_region
      _
    $region9: #{entity_embedding_forward.1} parent=1 // pred_fallthru
      _
    // Predicated region
    $region10: #{entity_embedding_forward.1} parent=1 // pred_check
      _
    $region11: #{entity_embedding_forward.1} parent=1 // pred_check_branch
      %22 = sbr.rel (0) target = $region13
    $region12: #{entity_embedding_forward.1} parent=1 // pred_region
      _
    $region13: #{entity_embedding_forward.1} parent=1 // pred_fallthru
      _
    // Predicated region
    $region14: #{entity_embedding_forward.1} parent=1 // pred_check
      _
    $region15: #{entity_embedding_forward.1} parent=1 // pred_check_branch
      %24 = sbr.rel (0) target = $region17
    $region16: #{entity_embedding_forward.1} parent=1 // pred_region
      _
    $region17: #{entity_embedding_forward.1} parent=1 // pred_fallthru
      _
    // Predicated region
    $region18: #{entity_embedding_forward.1} parent=1 // pred_check
      _
    $region19: #{entity_embedding_forward.1} parent=1 // pred_check_branch
      %26 = sbr.rel (0) target = $region21
    $region20: #{entity_embedding_forward.1} parent=1 // pred_region
      _
    $region21: #{entity_embedding_forward.1} parent=1 // pred_fallthru
      _
    // Predicated region
    $region22: #{entity_embedding_forward.1} parent=1 // pred_check
      _
    $region23: #{entity_embedding_forward.1} parent=1 // pred_check_branch
      %28 = sbr.rel (0) target = $region25
    $region24: #{entity_embedding_forward.1} parent=1 // pred_region
      _
    $region25: #{entity_embedding_forward.1} parent=1 // pred_fallthru
      _
    // Predicated region
    $region26: #{entity_embedding_forward.1} parent=1 // pred_check
      _
    $region27: #{entity_embedding_forward.1} parent=1 // pred_check_branch
      %30 = sbr.rel (0) target = $region29
    $region28: #{entity_embedding_forward.1} parent=1 // pred_region
      _
    $region29: #{entity_embedding_forward.1} parent=1 // pred_fallthru
      _
    // Predicated region
    $region30: #{entity_embedding_forward.1} parent=1 // pred_check
      _
    $region31: #{entity_embedding_forward.1} parent=1 // pred_check_branch
      %32 = sbr.rel (0) target = $region33
    $region32: #{entity_embedding_forward.1} parent=1 // pred_region
      _
    $region33: #{entity_embedding_forward.1} parent=1 // pred_fallthru
      _
    // Predicated region
    $region34: #{entity_embedding_forward.1} parent=1 // pred_check
      _
    $region35: #{entity_embedding_forward.1} parent=1 // pred_check_branch
      %34 = sbr.rel (0) target = $region37
    $region36: #{entity_embedding_forward.1} parent=1 // pred_region
      _
    $region37: #{entity_embedding_forward.1} parent=1 // pred_fallthru
      _
    // Predicated region
    $region38: #{entity_embedding_forward.1} parent=1 // pred_check
      _
    $region39: #{entity_embedding_forward.1} parent=1 // pred_check_branch
      %36 = sbr.rel (0) target = $region41
    $region40: #{entity_embedding_forward.1} parent=1 // pred_region
      _
    $region41: #{entity_embedding_forward.1} parent=1 // pred_fallthru
      _
    // Predicated region
    $region42: #{entity_embedding_forward.1} parent=1 // pred_check
      _
    $region43: #{entity_embedding_forward.1} parent=1 // pred_check_branch
      %38 = sbr.rel (0) target = $region45
    $region44: #{entity_embedding_forward.1} parent=1 // pred_region
      _
    $region45: #{entity_embedding_forward.1} parent=1 // pred_fallthru
      _
    %v39 = vld [vmem:[%s0] sm:$0xff]
    %v40 = vld [vmem:[%s0 + $0x8] sm:$0xff]
    %v41 = vld [vmem:[%s0 + $0x10] sm:$0xff]
    %v42 = vld [vmem:[%s0 + $0x18] sm:$0xff]
    %v43 = vld [vmem:[%s0 + $0x20] sm:$0xff]
    %v44 = vld [vmem:[%s0 + $0x28] sm:$0xff]
    %v45 = vld [vmem:[%s0 + $0x30] sm:$0xff]
    %v46 = vld [vmem:[%s0 + $0x38] sm:$0xff]
    %v47 = vld [vmem:[%s0 + $0x40] sm:$0xff]
    %v48 = vld [vmem:[%s0 + $0x48] sm:$0xff]
    %v49 = vld [vmem:[%s0 + $0x50] sm:$0xff]
    %v50 = vld [vmem:[%s0 + $0x58] sm:$0xff]
    %v51 = vld [vmem:[%s0 + $0x60] sm:$0xff]
    %v52 = vld [vmem:[%s0 + $0x68] sm:$0xff]
    %v53 = vld [vmem:[%s0 + $0x70] sm:$0xff]
    %v54 = vld [vmem:[%s0 + $0x78] sm:$0xff]
    %v55 = vld [vmem:[%s0 + $0x80] sm:$0xff]
    %v56 = vld [vmem:[%s0 + $0x88] sm:$0xff]
    %v57 = vld [vmem:[%s0 + $0x90] sm:$0xff]
    %v58 = vld [vmem:[%s0 + $0x98] sm:$0xff]
    %v59 = vld [vmem:[%s0 + $0xa0] sm:$0xff]
    %v60 = vld [vmem:[%s0 + $0xa8] sm:$0xff]
    %v61 = vld [vmem:[%s0 + $0xb0] sm:$0xff]
    %v62 = vld [vmem:[%s0 + $0xb8] sm:$0xff]
    %v63 = vld [vmem:[%s0 + $0xc0] sm:$0xff]
    %v64 = vld [vmem:[%s0 + $0xc8] sm:$0xff]
    %v65 = vld [vmem:[%s0 + $0xd0] sm:$0xff]
    %v66 = vld [vmem:[%s0 + $0xd8] sm:$0xff]
    %v67 = vld [vmem:[%s0 + $0xe0] sm:$0xff]
    %v68 = vld [vmem:[%s0 + $0xe8] sm:$0xff]
    %v69 = vld [vmem:[%s0 + $0xf0] sm:$0xff]
    %v70 = vld [vmem:[%s0 + $0xf8] sm:$0xff]
    %v71 = vld [vmem:[%s0 + $0x100] sm:$0xff]
    %v72 = vld [vmem:[%s0 + $0x108] sm:$0xff]
    %v73 = vld [vmem:[%s0 + $0x110] sm:$0xff]
    %v74 = vld [vmem:[%s0 + $0x118] sm:$0xff]
    %v75 = vld [vmem:[%s0 + $0x120] sm:$0xff]
    %v76 = vld [vmem:[%s0 + $0x128] sm:$0xff]
    %v77 = vld [vmem:[%s0 + $0x130] sm:$0xff]
    %v78 = vld [vmem:[%s0 + $0x138] sm:$0xff]
    %v79 = vld [vmem:[%s0 + $0x140] sm:$0xff]
    %v80 = vld [vmem:[%s0 + $0x148] sm:$0xff]
    %v81 = vld [vmem:[%s0 + $0x150] sm:$0xff]
    %v82 = vld [vmem:[%s0 + $0x158] sm:$0xff]
    %v83 = vld [vmem:[%s0 + $0x160] sm:$0xff]
    %v84 = vld [vmem:[%s0 + $0x168] sm:$0xff]
    %v85 = vld [vmem:[%s0 + $0x170] sm:$0xff]
    %v86 = vld [vmem:[%s0 + $0x178] sm:$0xff]
    %v87 = vld [vmem:[%s0 + $0x180] sm:$0xff]
    %v88 = vld [vmem:[%s0 + $0x188] sm:$0xff]
    %v89 = vld [vmem:[%s0 + $0x190] sm:$0xff]
    %v90 = vld [vmem:[%s0 + $0x198] sm:$0xff]
    %v91 = vld [vmem:[%s0 + $0x1a0] sm:$0xff]
    %v92 = vld [vmem:[%s0 + $0x1a8] sm:$0xff]
    %v93 = vld [vmem:[%s0 + $0x1b0] sm:$0xff]
    %v94 = vld [vmem:[%s0 + $0x1b8] sm:$0xff]
    %v95 = vld [vmem:[%s0 + $0x1c0] sm:$0xff]
    %v96 = vld [vmem:[%s0 + $0x1c8] sm:$0xff]
    %v97 = vld [vmem:[%s0 + $0x1d0] sm:$0xff]
    %v98 = vld [vmem:[%s0 + $0x1d8] sm:$0xff]
    %v99 = vld [vmem:[%s0 + $0x1e0] sm:$0xff]
    %v100 = vld [vmem:[%s0 + $0x1e8] sm:$0xff]
    %v101 = vld [vmem:[%s0 + $0x1f0] sm:$0xff]
    %v102 = vld [vmem:[%s0 + $0x1f8] sm:$0xff]
    %v103 = vld [vmem:[%s1] sm:$0xff]
    %v104 = vld [vmem:[%s1 + $0x8] sm:$0xff]
    %v105 = vld [vmem:[%s1 + $0x10] sm:$0xff]
    %v106 = vld [vmem:[%s2] sm:$0x1]
    %v108 = vlaneseq
    %v109 = vshrl.u32 %v108, 7
    %v110 = vsub.s32 0, %v109
    %v111 = vrot.slane %v106, %v110
    %vm113 = vcmask 195584
    %v115 = vsel %vm113, %v39, 0
    %v118 = vsel %vm113, %v40, 0
    %v121 = vsel %vm113, %v41, 0
    %v124 = vsel %vm113, %v42, 0
    %v127 = vsel %vm113, %v43, 0
    %v130 = vsel %vm113, %v44, 0
    %v133 = vsel %vm113, %v45, 0
    %v136 = vsel %vm113, %v46, 0
    %v139 = vsel %vm113, %v47, 0
    %v142 = vsel %vm113, %v48, 0
    %v145 = vsel %vm113, %v49, 0
    %v148 = vsel %vm113, %v50, 0
    %v151 = vsel %vm113, %v51, 0
    %v154 = vsel %vm113, %v52, 0
    %v157 = vsel %vm113, %v53, 0
    %v160 = vsel %vm113, %v54, 0
    %v163 = vsel %vm113, %v55, 0
    %v166 = vsel %vm113, %v56, 0
    %v169 = vsel %vm113, %v57, 0
    %v172 = vsel %vm113, %v58, 0
    %v175 = vsel %vm113, %v59, 0
    %v178 = vsel %vm113, %v60, 0
    %v181 = vsel %vm113, %v61, 0
    %v184 = vsel %vm113, %v62, 0
    %v187 = vsel %vm113, %v63, 0
    %v190 = vsel %vm113, %v64, 0
    %v193 = vsel %vm113, %v65, 0
    %v196 = vsel %vm113, %v66, 0
    %v199 = vsel %vm113, %v67, 0
    %v202 = vsel %vm113, %v68, 0
    %v205 = vsel %vm113, %v69, 0
    %v208 = vsel %vm113, %v70, 0
    %v211 = vsel %vm113, %v71, 0
    %v214 = vsel %vm113, %v72, 0
    %v217 = vsel %vm113, %v73, 0
    %v220 = vsel %vm113, %v74, 0
    %v223 = vsel %vm113, %v75, 0
    %v226 = vsel %vm113, %v76, 0
    %v229 = vsel %vm113, %v77, 0
    %v232 = vsel %vm113, %v78, 0
    %v235 = vsel %vm113, %v79, 0
    %v238 = vsel %vm113, %v80, 0
    %v241 = vsel %vm113, %v81, 0
    %v244 = vsel %vm113, %v82, 0
    %v247 = vsel %vm113, %v83, 0
    %v250 = vsel %vm113, %v84, 0
    %v253 = vsel %vm113, %v85, 0
    %v256 = vsel %vm113, %v86, 0
    %v259 = vsel %vm113, %v87, 0
    %v262 = vsel %vm113, %v88, 0
    %v265 = vsel %vm113, %v89, 0
    %v268 = vsel %vm113, %v90, 0
    %v271 = vsel %vm113, %v91, 0
    %v274 = vsel %vm113, %v92, 0
    %v277 = vsel %vm113, %v93, 0
    %v280 = vsel %vm113, %v94, 0
    %v283 = vsel %vm113, %v95, 0
    %v286 = vsel %vm113, %v96, 0
    %v289 = vsel %vm113, %v97, 0
    %v292 = vsel %vm113, %v98, 0
    %v295 = vsel %vm113, %v99, 0
    %v298 = vsel %vm113, %v100, 0
    %v301 = vsel %vm113, %v101, 0
    %v304 = vsel %vm113, %v102, 0
    %306 = vmatprep.subr.mxu0 0.0
    %307 = vmatpush1.msra.mxu0 0.0
    %308 = vmatprep.subr.mxu0 0.0
    %309 = vmatpush1.msra.mxu0 0.0
    %310 = vmatprep.subr.mxu0 0.0
    %311 = vmatpush1.msra.mxu0 0.0
    %312 = vmatprep.subr.mxu0 0.0
    %313 = vmatpush1.msra.mxu0 0.0
    %314 = vmatprep.subr.mxu0 0.0
    %315 = vmatpush1.msra.mxu0 0.0
    %316 = vmatprep.subr.mxu0 0.0
    %317 = vmatpush1.msra.mxu0 0.0
    %318 = vmatprep.subr.mxu0 0.0
    %319 = vmatpush1.msra.mxu0 0.0
    %320 = vmatprep.subr.mxu0 0.0
    %321 = vmatpush1.msra.mxu0 0.0
    %322 = vmatprep.subr.mxu0 0.0
    %323 = vmatpush1.msra.mxu0 0.0
    %324 = vmatprep.subr.mxu0 0.0
    %325 = vmatpush1.msra.mxu0 0.0
    %326 = vmatprep.subr.mxu0 0.0
    %327 = vmatpush1.msra.mxu0 0.0
    %328 = vmatprep.subr.mxu0 0.0
    %329 = vmatpush1.msra.mxu0 0.0
    %330 = vmatprep.subr.mxu0 0.0
    %331 = vmatpush1.msra.mxu0 0.0
    %332 = vmatprep.subr.mxu0 0.0
    %333 = vmatpush1.msra.mxu0 %v105
    %334 = vmatprep.subr.mxu0 0.0
    %335 = vmatpush1.msra.mxu0 %v104
    %336 = vmatprep.subr.mxu0 0.0
    %337 = vmatpush1.msra.mxu0 %v103
    %338 = vmatprep.subr.mxu0 0.0
    %339 = vmatpush2.msra.mxu0 0.0
    %340 = vmatprep.subr.mxu0 0.0
    %341 = vmatpush2.msra.mxu0 0.0
    %342 = vmatprep.subr.mxu0 0.0
    %343 = vmatpush2.msra.mxu0 0.0
    %344 = vmatprep.subr.mxu0 0.0
    %345 = vmatpush2.msra.mxu0 0.0
    %346 = vmatprep.subr.mxu0 0.0
    %347 = vmatpush2.msra.mxu0 0.0
    %348 = vmatprep.subr.mxu0 0.0
    %349 = vmatpush2.msra.mxu0 0.0
    %350 = vmatprep.subr.mxu0 0.0
    %351 = vmatpush2.msra.mxu0 0.0
    %352 = vmatprep.subr.mxu0 0.0
    %353 = vmatpush2.msra.mxu0 0.0
    %354 = vmatprep.subr.mxu0 0.0
    %355 = vmatpush2.msra.mxu0 0.0
    %356 = vmatprep.subr.mxu0 0.0
    %357 = vmatpush2.msra.mxu0 0.0
    %358 = vmatprep.subr.mxu0 0.0
    %359 = vmatpush2.msra.mxu0 0.0
    %360 = vmatprep.subr.mxu0 0.0
    %361 = vmatpush2.msra.mxu0 0.0
    %362 = vmatprep.subr.mxu0 0.0
    %363 = vmatpush2.msra.mxu0 0.0
    %364 = vmatprep.subr.mxu0 0.0
    %365 = vmatpush2.msra.mxu0 0.0
    %366 = vmatprep.subr.mxu0 0.0
    %367 = vmatpush2.msra.mxu0 0.0
    %368 = vmatprep.subr.mxu0 0.0
    %369 = vmatpush2.msra.mxu0 0.0
    %370 = vmatprep.mubr.f32.mxu0 0.0
    %371 = vmatmul.mubr.f32.gmra.mxu0 %v115
    %v372 = vpop.f32.mrf.mxu0
    %v373 = vadd.f32 %v111, %v372
    %v374 = vpop.f32.mrf.mxu0
    %375 = vmatprep.mubr.f32.mxu0 0.0
    %376 = vmatmul.mubr.f32.gmra.mxu0 %v118
    %v377 = vpop.f32.mrf.mxu0
    %v378 = vadd.f32 %v111, %v377
    %v379 = vpop.f32.mrf.mxu0
    %380 = vmatprep.mubr.f32.mxu0 0.0
    %381 = vmatmul.mubr.f32.gmra.mxu0 %v121
    %v382 = vpop.f32.mrf.mxu0
    %v383 = vadd.f32 %v111, %v382
    %v384 = vpop.f32.mrf.mxu0
    %385 = vmatprep.mubr.f32.mxu0 0.0
    %386 = vmatmul.mubr.f32.gmra.mxu0 %v124
    %v387 = vpop.f32.mrf.mxu0
    %v388 = vadd.f32 %v111, %v387
    %v389 = vpop.f32.mrf.mxu0
    %390 = vmatprep.mubr.f32.mxu0 0.0
    %391 = vmatmul.mubr.f32.gmra.mxu0 %v127
    %v392 = vpop.f32.mrf.mxu0
    %v393 = vadd.f32 %v111, %v392
    %v394 = vpop.f32.mrf.mxu0
    %395 = vmatprep.mubr.f32.mxu0 0.0
    %396 = vmatmul.mubr.f32.gmra.mxu0 %v130
    %v397 = vpop.f32.mrf.mxu0
    %v398 = vadd.f32 %v111, %v397
    %v399 = vpop.f32.mrf.mxu0
    %400 = vmatprep.mubr.f32.mxu0 0.0
    %401 = vmatmul.mubr.f32.gmra.mxu0 %v133
    %v402 = vpop.f32.mrf.mxu0
    %v403 = vadd.f32 %v111, %v402
    %v404 = vpop.f32.mrf.mxu0
    %405 = vmatprep.mubr.f32.mxu0 0.0
    %406 = vmatmul.mubr.f32.gmra.mxu0 %v136
    %v407 = vpop.f32.mrf.mxu0
    %v408 = vadd.f32 %v111, %v407
    %v409 = vpop.f32.mrf.mxu0
    %410 = vmatprep.mubr.f32.mxu0 0.0
    %411 = vmatmul.mubr.f32.gmra.mxu0 %v139
    %v412 = vpop.f32.mrf.mxu0
    %v413 = vadd.f32 %v111, %v412
    %v414 = vpop.f32.mrf.mxu0
    %415 = vmatprep.mubr.f32.mxu0 0.0
    %416 = vmatmul.mubr.f32.gmra.mxu0 %v142
    %v417 = vpop.f32.mrf.mxu0
    %v418 = vadd.f32 %v111, %v417
    %v419 = vpop.f32.mrf.mxu0
    %420 = vmatprep.mubr.f32.mxu0 0.0
    %421 = vmatmul.mubr.f32.gmra.mxu0 %v145
    %v422 = vpop.f32.mrf.mxu0
    %v423 = vadd.f32 %v111, %v422
    %v424 = vpop.f32.mrf.mxu0
    %425 = vmatprep.mubr.f32.mxu0 0.0
    %426 = vmatmul.mubr.f32.gmra.mxu0 %v148
    %v427 = vpop.f32.mrf.mxu0
    %v428 = vadd.f32 %v111, %v427
    %v429 = vpop.f32.mrf.mxu0
    %430 = vmatprep.mubr.f32.mxu0 0.0
    %431 = vmatmul.mubr.f32.gmra.mxu0 %v151
    %v432 = vpop.f32.mrf.mxu0
    %v433 = vadd.f32 %v111, %v432
    %v434 = vpop.f32.mrf.mxu0
    %435 = vmatprep.mubr.f32.mxu0 0.0
    %436 = vmatmul.mubr.f32.gmra.mxu0 %v154
    %v437 = vpop.f32.mrf.mxu0
    %v438 = vadd.f32 %v111, %v437
    %v439 = vpop.f32.mrf.mxu0
    %440 = vmatprep.mubr.f32.mxu0 0.0
    %441 = vmatmul.mubr.f32.gmra.mxu0 %v157
    %v442 = vpop.f32.mrf.mxu0
    %v443 = vadd.f32 %v111, %v442
    %v444 = vpop.f32.mrf.mxu0
    %445 = vmatprep.mubr.f32.mxu0 0.0
    %446 = vmatmul.mubr.f32.gmra.mxu0 %v160
    %v447 = vpop.f32.mrf.mxu0
    %v448 = vadd.f32 %v111, %v447
    %v449 = vpop.f32.mrf.mxu0
    %450 = vmatprep.mubr.f32.mxu0 0.0
    %451 = vmatmul.mubr.f32.gmra.mxu0 %v163
    %v452 = vpop.f32.mrf.mxu0
    %v453 = vadd.f32 %v111, %v452
    %v454 = vpop.f32.mrf.mxu0
    %455 = vmatprep.mubr.f32.mxu0 0.0
    %456 = vmatmul.mubr.f32.gmra.mxu0 %v166
    %v457 = vpop.f32.mrf.mxu0
    %v458 = vadd.f32 %v111, %v457
    %v459 = vpop.f32.mrf.mxu0
    %460 = vmatprep.mubr.f32.mxu0 0.0
    %461 = vmatmul.mubr.f32.gmra.mxu0 %v169
    %v462 = vpop.f32.mrf.mxu0
    %v463 = vadd.f32 %v111, %v462
    %v464 = vpop.f32.mrf.mxu0
    %465 = vmatprep.mubr.f32.mxu0 0.0
    %466 = vmatmul.mubr.f32.gmra.mxu0 %v172
    %v467 = vpop.f32.mrf.mxu0
    %v468 = vadd.f32 %v111, %v467
    %v469 = vpop.f32.mrf.mxu0
    %470 = vmatprep.mubr.f32.mxu0 0.0
    %471 = vmatmul.mubr.f32.gmra.mxu0 %v175
    %v472 = vpop.f32.mrf.mxu0
    %v473 = vadd.f32 %v111, %v472
    %v474 = vpop.f32.mrf.mxu0
    %475 = vmatprep.mubr.f32.mxu0 0.0
    %476 = vmatmul.mubr.f32.gmra.mxu0 %v178
    %v477 = vpop.f32.mrf.mxu0
    %v478 = vadd.f32 %v111, %v477
    %v479 = vpop.f32.mrf.mxu0
    %480 = vmatprep.mubr.f32.mxu0 0.0
    %481 = vmatmul.mubr.f32.gmra.mxu0 %v181
    %v482 = vpop.f32.mrf.mxu0
    %v483 = vadd.f32 %v111, %v482
    %v484 = vpop.f32.mrf.mxu0
    %485 = vmatprep.mubr.f32.mxu0 0.0
    %486 = vmatmul.mubr.f32.gmra.mxu0 %v184
    %v487 = vpop.f32.mrf.mxu0
    %v488 = vadd.f32 %v111, %v487
    %v489 = vpop.f32.mrf.mxu0
    %490 = vmatprep.mubr.f32.mxu0 0.0
    %491 = vmatmul.mubr.f32.gmra.mxu0 %v187
    %v492 = vpop.f32.mrf.mxu0
    %v493 = vadd.f32 %v111, %v492
    %v494 = vpop.f32.mrf.mxu0
    %495 = vmatprep.mubr.f32.mxu0 0.0
    %496 = vmatmul.mubr.f32.gmra.mxu0 %v190
    %v497 = vpop.f32.mrf.mxu0
    %v498 = vadd.f32 %v111, %v497
    %v499 = vpop.f32.mrf.mxu0
    %500 = vmatprep.mubr.f32.mxu0 0.0
    %501 = vmatmul.mubr.f32.gmra.mxu0 %v193
    %v502 = vpop.f32.mrf.mxu0
    %v503 = vadd.f32 %v111, %v502
    %v504 = vpop.f32.mrf.mxu0
    %505 = vmatprep.mubr.f32.mxu0 0.0
    %506 = vmatmul.mubr.f32.gmra.mxu0 %v196
    %v507 = vpop.f32.mrf.mxu0
    %v508 = vadd.f32 %v111, %v507
    %v509 = vpop.f32.mrf.mxu0
    %510 = vmatprep.mubr.f32.mxu0 0.0
    %511 = vmatmul.mubr.f32.gmra.mxu0 %v199
    %v512 = vpop.f32.mrf.mxu0
    %v513 = vadd.f32 %v111, %v512
    %v514 = vpop.f32.mrf.mxu0
    %515 = vmatprep.mubr.f32.mxu0 0.0
    %516 = vmatmul.mubr.f32.gmra.mxu0 %v202
    %v517 = vpop.f32.mrf.mxu0
    %v518 = vadd.f32 %v111, %v517
    %v519 = vpop.f32.mrf.mxu0
    %520 = vmatprep.mubr.f32.mxu0 0.0
    %521 = vmatmul.mubr.f32.gmra.mxu0 %v205
    %v522 = vpop.f32.mrf.mxu0
    %v523 = vadd.f32 %v111, %v522
    %v524 = vpop.f32.mrf.mxu0
    %525 = vmatprep.mubr.f32.mxu0 0.0
    %526 = vmatmul.mubr.f32.gmra.mxu0 %v208
    %v527 = vpop.f32.mrf.mxu0
    %v528 = vadd.f32 %v111, %v527
    %v529 = vpop.f32.mrf.mxu0
    %530 = vmatprep.mubr.f32.mxu0 0.0
    %531 = vmatmul.mubr.f32.gmra.mxu0 %v211
    %v532 = vpop.f32.mrf.mxu0
    %v533 = vadd.f32 %v111, %v532
    %v534 = vpop.f32.mrf.mxu0
    %535 = vmatprep.mubr.f32.mxu0 0.0
    %536 = vmatmul.mubr.f32.gmra.mxu0 %v214
    %v537 = vpop.f32.mrf.mxu0
    %v538 = vadd.f32 %v111, %v537
    %v539 = vpop.f32.mrf.mxu0
    %540 = vmatprep.mubr.f32.mxu0 0.0
    %541 = vmatmul.mubr.f32.gmra.mxu0 %v217
    %v542 = vpop.f32.mrf.mxu0
    %v543 = vadd.f32 %v111, %v542
    %v544 = vpop.f32.mrf.mxu0
    %545 = vmatprep.mubr.f32.mxu0 0.0
    %546 = vmatmul.mubr.f32.gmra.mxu0 %v220
    %v547 = vpop.f32.mrf.mxu0
    %v548 = vadd.f32 %v111, %v547
    %v549 = vpop.f32.mrf.mxu0
    %550 = vmatprep.mubr.f32.mxu0 0.0
    %551 = vmatmul.mubr.f32.gmra.mxu0 %v223
    %v552 = vpop.f32.mrf.mxu0
    %v553 = vadd.f32 %v111, %v552
    %v554 = vpop.f32.mrf.mxu0
    %555 = vmatprep.mubr.f32.mxu0 0.0
    %556 = vmatmul.mubr.f32.gmra.mxu0 %v226
    %v557 = vpop.f32.mrf.mxu0
    %v558 = vadd.f32 %v111, %v557
    %v559 = vpop.f32.mrf.mxu0
    %560 = vmatprep.mubr.f32.mxu0 0.0
    %561 = vmatmul.mubr.f32.gmra.mxu0 %v229
    %v562 = vpop.f32.mrf.mxu0
    %v563 = vadd.f32 %v111, %v562
    %v564 = vpop.f32.mrf.mxu0
    %565 = vmatprep.mubr.f32.mxu0 0.0
    %566 = vmatmul.mubr.f32.gmra.mxu0 %v232
    %v567 = vpop.f32.mrf.mxu0
    %v568 = vadd.f32 %v111, %v567
    %v569 = vpop.f32.mrf.mxu0
    %570 = vmatprep.mubr.f32.mxu0 0.0
    %571 = vmatmul.mubr.f32.gmra.mxu0 %v235
    %v572 = vpop.f32.mrf.mxu0
    %v573 = vadd.f32 %v111, %v572
    %v574 = vpop.f32.mrf.mxu0
    %575 = vmatprep.mubr.f32.mxu0 0.0
    %576 = vmatmul.mubr.f32.gmra.mxu0 %v238
    %v577 = vpop.f32.mrf.mxu0
    %v578 = vadd.f32 %v111, %v577
    %v579 = vpop.f32.mrf.mxu0
    %580 = vmatprep.mubr.f32.mxu0 0.0
    %581 = vmatmul.mubr.f32.gmra.mxu0 %v241
    %v582 = vpop.f32.mrf.mxu0
    %v583 = vadd.f32 %v111, %v582
    %v584 = vpop.f32.mrf.mxu0
    %585 = vmatprep.mubr.f32.mxu0 0.0
    %586 = vmatmul.mubr.f32.gmra.mxu0 %v244
    %v587 = vpop.f32.mrf.mxu0
    %v588 = vadd.f32 %v111, %v587
    %v589 = vpop.f32.mrf.mxu0
    %590 = vmatprep.mubr.f32.mxu0 0.0
    %591 = vmatmul.mubr.f32.gmra.mxu0 %v247
    %v592 = vpop.f32.mrf.mxu0
    %v593 = vadd.f32 %v111, %v592
    %v594 = vpop.f32.mrf.mxu0
    %595 = vmatprep.mubr.f32.mxu0 0.0
    %596 = vmatmul.mubr.f32.gmra.mxu0 %v250
    %v597 = vpop.f32.mrf.mxu0
    %v598 = vadd.f32 %v111, %v597
    %v599 = vpop.f32.mrf.mxu0
    %600 = vmatprep.mubr.f32.mxu0 0.0
    %601 = vmatmul.mubr.f32.gmra.mxu0 %v253
    %v602 = vpop.f32.mrf.mxu0
    %v603 = vadd.f32 %v111, %v602
    %v604 = vpop.f32.mrf.mxu0
    %605 = vmatprep.mubr.f32.mxu0 0.0
    %606 = vmatmul.mubr.f32.gmra.mxu0 %v256
    %v607 = vpop.f32.mrf.mxu0
    %v608 = vadd.f32 %v111, %v607
    %v609 = vpop.f32.mrf.mxu0
    %610 = vmatprep.mubr.f32.mxu0 0.0
    %611 = vmatmul.mubr.f32.gmra.mxu0 %v259
    %v612 = vpop.f32.mrf.mxu0
    %v613 = vadd.f32 %v111, %v612
    %v614 = vpop.f32.mrf.mxu0
    %615 = vmatprep.mubr.f32.mxu0 0.0
    %616 = vmatmul.mubr.f32.gmra.mxu0 %v262
    %v617 = vpop.f32.mrf.mxu0
    %v618 = vadd.f32 %v111, %v617
    %v619 = vpop.f32.mrf.mxu0
    %620 = vmatprep.mubr.f32.mxu0 0.0
    %621 = vmatmul.mubr.f32.gmra.mxu0 %v265
    %v622 = vpop.f32.mrf.mxu0
    %v623 = vadd.f32 %v111, %v622
    %v624 = vpop.f32.mrf.mxu0
    %625 = vmatprep.mubr.f32.mxu0 0.0
    %626 = vmatmul.mubr.f32.gmra.mxu0 %v268
    %v627 = vpop.f32.mrf.mxu0
    %v628 = vadd.f32 %v111, %v627
    %v629 = vpop.f32.mrf.mxu0
    %630 = vmatprep.mubr.f32.mxu0 0.0
    %631 = vmatmul.mubr.f32.gmra.mxu0 %v271
    %v632 = vpop.f32.mrf.mxu0
    %v633 = vadd.f32 %v111, %v632
    %v634 = vpop.f32.mrf.mxu0
    %635 = vmatprep.mubr.f32.mxu0 0.0
    %636 = vmatmul.mubr.f32.gmra.mxu0 %v274
    %v637 = vpop.f32.mrf.mxu0
    %v638 = vadd.f32 %v111, %v637
    %v639 = vpop.f32.mrf.mxu0
    %640 = vmatprep.mubr.f32.mxu0 0.0
    %641 = vmatmul.mubr.f32.gmra.mxu0 %v277
    %v642 = vpop.f32.mrf.mxu0
    %v643 = vadd.f32 %v111, %v642
    %v644 = vpop.f32.mrf.mxu0
    %645 = vmatprep.mubr.f32.mxu0 0.0
    %646 = vmatmul.mubr.f32.gmra.mxu0 %v280
    %v647 = vpop.f32.mrf.mxu0
    %v648 = vadd.f32 %v111, %v647
    %v649 = vpop.f32.mrf.mxu0
    %650 = vmatprep.mubr.f32.mxu0 0.0
    %651 = vmatmul.mubr.f32.gmra.mxu0 %v283
    %v652 = vpop.f32.mrf.mxu0
    %v653 = vadd.f32 %v111, %v652
    %v654 = vpop.f32.mrf.mxu0
    %655 = vmatprep.mubr.f32.mxu0 0.0
    %656 = vmatmul.mubr.f32.gmra.mxu0 %v286
    %v657 = vpop.f32.mrf.mxu0
    %v658 = vadd.f32 %v111, %v657
    %v659 = vpop.f32.mrf.mxu0
    %660 = vmatprep.mubr.f32.mxu0 0.0
    %661 = vmatmul.mubr.f32.gmra.mxu0 %v289
    %v662 = vpop.f32.mrf.mxu0
    %v663 = vadd.f32 %v111, %v662
    %v664 = vpop.f32.mrf.mxu0
    %665 = vmatprep.mubr.f32.mxu0 0.0
    %666 = vmatmul.mubr.f32.gmra.mxu0 %v292
    %v667 = vpop.f32.mrf.mxu0
    %v668 = vadd.f32 %v111, %v667
    %v669 = vpop.f32.mrf.mxu0
    %670 = vmatprep.mubr.f32.mxu0 0.0
    %671 = vmatmul.mubr.f32.gmra.mxu0 %v295
    %v672 = vpop.f32.mrf.mxu0
    %v673 = vadd.f32 %v111, %v672
    %v674 = vpop.f32.mrf.mxu0
    %675 = vmatprep.mubr.f32.mxu0 0.0
    %676 = vmatmul.mubr.f32.gmra.mxu0 %v298
    %v677 = vpop.f32.mrf.mxu0
    %v678 = vadd.f32 %v111, %v677
    %v679 = vpop.f32.mrf.mxu0
    %680 = vmatprep.mubr.f32.mxu0 0.0
    %681 = vmatmul.mubr.f32.gmra.mxu0 %v301
    %v682 = vpop.f32.mrf.mxu0
    %v683 = vadd.f32 %v111, %v682
    %v684 = vpop.f32.mrf.mxu0
    %685 = vmatprep.mubr.f32.mxu0 0.0
    %686 = vmatmul.mubr.f32.gmra.mxu0 %v304
    %v687 = vpop.f32.mrf.mxu0
    %v688 = vadd.f32 %v111, %v687
    %v689 = vpop.f32.mrf.mxu0
    %690 = vdwg.mxu0
    %v691 = vmax.f32 %v373, %v413
    %v692 = vmax.f32 %v378, %v418
    %v693 = vmax.f32 %v383, %v423
    %v694 = vmax.f32 %v388, %v428
    %v695 = vmax.f32 %v393, %v433
    %v696 = vmax.f32 %v398, %v438
    %v697 = vmax.f32 %v403, %v443
    %v698 = vmax.f32 %v408, %v448
    %v699 = vmax.f32 %v691, %v453
    %v700 = vmax.f32 %v692, %v458
    %v701 = vmax.f32 %v693, %v463
    %v702 = vmax.f32 %v694, %v468
    %v703 = vmax.f32 %v695, %v473
    %v704 = vmax.f32 %v696, %v478
    %v705 = vmax.f32 %v697, %v483
    %v706 = vmax.f32 %v698, %v488
    %v707 = vmax.f32 %v699, %v493
    %v708 = vmax.f32 %v700, %v498
    %v709 = vmax.f32 %v701, %v503
    %v710 = vmax.f32 %v702, %v508
    %v711 = vmax.f32 %v703, %v513
    %v712 = vmax.f32 %v704, %v518
    %v713 = vmax.f32 %v705, %v523
    %v714 = vmax.f32 %v706, %v528
    %v715 = vmax.f32 %v707, %v533
    %v716 = vmax.f32 %v708, %v538
    %v717 = vmax.f32 %v709, %v543
    %v718 = vmax.f32 %v710, %v548
    %v719 = vmax.f32 %v711, %v553
    %v720 = vmax.f32 %v712, %v558
    %v721 = vmax.f32 %v713, %v563
    %v722 = vmax.f32 %v714, %v568
    %v723 = vmax.f32 %v715, %v573
    %v724 = vmax.f32 %v716, %v578
    %v725 = vmax.f32 %v717, %v583
    %v726 = vmax.f32 %v718, %v588
    %v727 = vmax.f32 %v719, %v593
    %v728 = vmax.f32 %v720, %v598
    %v729 = vmax.f32 %v721, %v603
    %v730 = vmax.f32 %v722, %v608
    %v731 = vmax.f32 %v723, %v613
    %v732 = vmax.f32 %v724, %v618
    %v733 = vmax.f32 %v725, %v623
    %v734 = vmax.f32 %v726, %v628
    %v735 = vmax.f32 %v727, %v633
    %v736 = vmax.f32 %v728, %v638
    %v737 = vmax.f32 %v729, %v643
    %v738 = vmax.f32 %v730, %v648
    %v739 = vmax.f32 %v731, %v653
    %v740 = vmax.f32 %v732, %v658
    %v741 = vmax.f32 %v733, %v663
    %v742 = vmax.f32 %v734, %v668
    %v743 = vmax.f32 %v735, %v673
    %v744 = vmax.f32 %v736, %v678
    %v745 = vmax.f32 %v737, %v683
    %v746 = vmax.f32 %v738, %v688
    %v747 = vtanh.pop %v739
    %v748 = vtanh.pop %v740
    %v749 = vtanh.pop %v741
    %v750 = vtanh.pop %v742
    %v751 = vtanh.pop %v743
    %v752 = vtanh.pop %v744
    %v753 = vtanh.pop %v745
    %v754 = vtanh.pop %v746
    %v755 = vld [vmem:[%s3] sm:$0xff]
    %v756 = vld [vmem:[%s3 + $0x8] sm:$0xff]
    %v757 = vld [vmem:[%s3 + $0x10] sm:$0xff]
    %v758 = vld [vmem:[%s3 + $0x18] sm:$0xff]
    %v759 = vld [vmem:[%s3 + $0x20] sm:$0xff]
    %v760 = vld [vmem:[%s3 + $0x28] sm:$0xff]
    %v761 = vld [vmem:[%s3 + $0x30] sm:$0xff]
    %v762 = vld [vmem:[%s3 + $0x38] sm:$0xff]
    %771 = vrot.lane.b32.xlu0 %v747, 16
    %v772 = vpop.permute.xlu0 %771
    %773 = vrot.lane.b32.xlu0 %v748, 16
    %v774 = vpop.permute.xlu0 %773
    %775 = vrot.lane.b32.xlu0 %v749, 16
    %v776 = vpop.permute.xlu0 %775
    %777 = vrot.lane.b32.xlu0 %v750, 16
    %v778 = vpop.permute.xlu0 %777
    %779 = vrot.lane.b32.xlu0 %v751, 16
    %v780 = vpop.permute.xlu0 %779
    %781 = vrot.lane.b32.xlu0 %v752, 16
    %v782 = vpop.permute.xlu0 %781
    %783 = vrot.lane.b32.xlu0 %v753, 16
    %v784 = vpop.permute.xlu0 %783
    %785 = vrot.lane.b32.xlu0 %v754, 16
    %v786 = vpop.permute.xlu0 %785
    %vm795 = vcmask 130048
    %v796 = vsel %vm795, %v755, %v772
    %v797 = vsel %vm795, %v756, %v774
    %v798 = vsel %vm795, %v757, %v776
    %v799 = vsel %vm795, %v758, %v778
    %v800 = vsel %vm795, %v759, %v780
    %v801 = vsel %vm795, %v760, %v782
    %v802 = vsel %vm795, %v761, %v784
    %v803 = vsel %vm795, %v762, %v786
    %v804 = vld [vmem:[%s4] sm:$0xff]
    %v805 = vld [vmem:[%s4 + $0x8] sm:$0xff]
    %v806 = vld [vmem:[%s4 + $0x10] sm:$0xff]
    %v807 = vld [vmem:[%s4 + $0x18] sm:$0xff]
    %v808 = vld [vmem:[%s7] sm:$0x1]
    %v810 = vlaneseq
    %v811 = vshrl.u32 %v810, 7
    %v812 = vsub.s32 0, %v811
    %v813 = vrot.slane %v808, %v812
    %vm815 = vcmask 261120
    %v817 = vsel %vm815, %v796, 0
    %v820 = vsel %vm815, %v797, 0
    %v823 = vsel %vm815, %v798, 0
    %v826 = vsel %vm815, %v799, 0
    %v829 = vsel %vm815, %v800, 0
    %v832 = vsel %vm815, %v801, 0
    %v835 = vsel %vm815, %v802, 0
    %v838 = vsel %vm815, %v803, 0
    %840 = vmatprep.subr.mxu0 0.0
    %841 = vmatpush1.msra.mxu0 0.0
    %842 = vmatprep.subr.mxu0 0.0
    %843 = vmatpush1.msra.mxu0 0.0
    %844 = vmatprep.subr.mxu0 0.0
    %845 = vmatpush1.msra.mxu0 0.0
    %846 = vmatprep.subr.mxu0 0.0
    %847 = vmatpush1.msra.mxu0 0.0
    %848 = vmatprep.subr.mxu0 0.0
    %849 = vmatpush1.msra.mxu0 0.0
    %850 = vmatprep.subr.mxu0 0.0
    %851 = vmatpush1.msra.mxu0 0.0
    %852 = vmatprep.subr.mxu0 0.0
    %853 = vmatpush1.msra.mxu0 0.0
    %854 = vmatprep.subr.mxu0 0.0
    %855 = vmatpush1.msra.mxu0 0.0
    %856 = vmatprep.subr.mxu0 0.0
    %857 = vmatpush1.msra.mxu0 0.0
    %858 = vmatprep.subr.mxu0 0.0
    %859 = vmatpush1.msra.mxu0 0.0
    %860 = vmatprep.subr.mxu0 0.0
    %861 = vmatpush1.msra.mxu0 0.0
    %862 = vmatprep.subr.mxu0 0.0
    %863 = vmatpush1.msra.mxu0 0.0
    %864 = vmatprep.subr.mxu0 0.0
    %865 = vmatpush1.msra.mxu0 %v807
    %866 = vmatprep.subr.mxu0 0.0
    %867 = vmatpush1.msra.mxu0 %v806
    %868 = vmatprep.subr.mxu0 0.0
    %869 = vmatpush1.msra.mxu0 %v805
    %870 = vmatprep.subr.mxu0 0.0
    %871 = vmatpush1.msra.mxu0 %v804
    %872 = vmatprep.subr.mxu0 0.0
    %873 = vmatpush2.msra.mxu0 0.0
    %874 = vmatprep.subr.mxu0 0.0
    %875 = vmatpush2.msra.mxu0 0.0
    %876 = vmatprep.subr.mxu0 0.0
    %877 = vmatpush2.msra.mxu0 0.0
    %878 = vmatprep.subr.mxu0 0.0
    %879 = vmatpush2.msra.mxu0 0.0
    %880 = vmatprep.subr.mxu0 0.0
    %881 = vmatpush2.msra.mxu0 0.0
    %882 = vmatprep.subr.mxu0 0.0
    %883 = vmatpush2.msra.mxu0 0.0
    %884 = vmatprep.subr.mxu0 0.0
    %885 = vmatpush2.msra.mxu0 0.0
    %886 = vmatprep.subr.mxu0 0.0
    %887 = vmatpush2.msra.mxu0 0.0
    %888 = vmatprep.subr.mxu0 0.0
    %889 = vmatpush2.msra.mxu0 0.0
    %890 = vmatprep.subr.mxu0 0.0
    %891 = vmatpush2.msra.mxu0 0.0
    %892 = vmatprep.subr.mxu0 0.0
    %893 = vmatpush2.msra.mxu0 0.0
    %894 = vmatprep.subr.mxu0 0.0
    %895 = vmatpush2.msra.mxu0 0.0
    %896 = vmatprep.subr.mxu0 0.0
    %897 = vmatpush2.msra.mxu0 0.0
    %898 = vmatprep.subr.mxu0 0.0
    %899 = vmatpush2.msra.mxu0 0.0
    %900 = vmatprep.subr.mxu0 0.0
    %901 = vmatpush2.msra.mxu0 0.0
    %902 = vmatprep.subr.mxu0 0.0
    %903 = vmatpush2.msra.mxu0 0.0
    %904 = vmatprep.mubr.f32.mxu0 0.0
    %905 = vmatmul.mubr.f32.gmra.mxu0 %v817
    %v906 = vpop.f32.mrf.mxu0
    %v907 = vadd.f32 %v813, %v906
    %v908 = vpop.f32.mrf.mxu0
    %909 = vmatprep.mubr.f32.mxu0 0.0
    %910 = vmatmul.mubr.f32.gmra.mxu0 %v820
    %v911 = vpop.f32.mrf.mxu0
    %v912 = vadd.f32 %v813, %v911
    %v913 = vpop.f32.mrf.mxu0
    %914 = vmatprep.mubr.f32.mxu0 0.0
    %915 = vmatmul.mubr.f32.gmra.mxu0 %v823
    %v916 = vpop.f32.mrf.mxu0
    %v917 = vadd.f32 %v813, %v916
    %v918 = vpop.f32.mrf.mxu0
    %919 = vmatprep.mubr.f32.mxu0 0.0
    %920 = vmatmul.mubr.f32.gmra.mxu0 %v826
    %v921 = vpop.f32.mrf.mxu0
    %v922 = vadd.f32 %v813, %v921
    %v923 = vpop.f32.mrf.mxu0
    %924 = vmatprep.mubr.f32.mxu0 0.0
    %925 = vmatmul.mubr.f32.gmra.mxu0 %v829
    %v926 = vpop.f32.mrf.mxu0
    %v927 = vadd.f32 %v813, %v926
    %v928 = vpop.f32.mrf.mxu0
    %929 = vmatprep.mubr.f32.mxu0 0.0
    %930 = vmatmul.mubr.f32.gmra.mxu0 %v832
    %v931 = vpop.f32.mrf.mxu0
    %v932 = vadd.f32 %v813, %v931
    %v933 = vpop.f32.mrf.mxu0
    %934 = vmatprep.mubr.f32.mxu0 0.0
    %935 = vmatmul.mubr.f32.gmra.mxu0 %v835
    %v936 = vpop.f32.mrf.mxu0
    %v937 = vadd.f32 %v813, %v936
    %v938 = vpop.f32.mrf.mxu0
    %939 = vmatprep.mubr.f32.mxu0 0.0
    %940 = vmatmul.mubr.f32.gmra.mxu0 %v838
    %v941 = vpop.f32.mrf.mxu0
    %v942 = vadd.f32 %v813, %v941
    %v943 = vpop.f32.mrf.mxu0
    %944 = vdwg.mxu0
    %v945 = vld [vmem:[%s5] sm:$0xff]
    %v946 = vld [vmem:[%s5 + $0x8] sm:$0xff]
    %v947 = vld [vmem:[%s5 + $0x10] sm:$0xff]
    %v948 = vld [vmem:[%s5 + $0x18] sm:$0xff]
    %949 = vmatprep.subr.mxu0 0.0
    %950 = vmatpush1.msra.mxu0 0.0
    %951 = vmatprep.subr.mxu0 0.0
    %952 = vmatpush1.msra.mxu0 0.0
    %953 = vmatprep.subr.mxu0 0.0
    %954 = vmatpush1.msra.mxu0 0.0
    %955 = vmatprep.subr.mxu0 0.0
    %956 = vmatpush1.msra.mxu0 0.0
    %957 = vmatprep.subr.mxu0 0.0
    %958 = vmatpush1.msra.mxu0 0.0
    %959 = vmatprep.subr.mxu0 0.0
    %960 = vmatpush1.msra.mxu0 0.0
    %961 = vmatprep.subr.mxu0 0.0
    %962 = vmatpush1.msra.mxu0 0.0
    %963 = vmatprep.subr.mxu0 0.0
    %964 = vmatpush1.msra.mxu0 0.0
    %965 = vmatprep.subr.mxu0 0.0
    %966 = vmatpush1.msra.mxu0 0.0
    %967 = vmatprep.subr.mxu0 0.0
    %968 = vmatpush1.msra.mxu0 0.0
    %969 = vmatprep.subr.mxu0 0.0
    %970 = vmatpush1.msra.mxu0 0.0
    %971 = vmatprep.subr.mxu0 0.0
    %972 = vmatpush1.msra.mxu0 0.0
    %973 = vmatprep.subr.mxu0 0.0
    %974 = vmatpush1.msra.mxu0 %v948
    %975 = vmatprep.subr.mxu0 0.0
    %976 = vmatpush1.msra.mxu0 %v947
    %977 = vmatprep.subr.mxu0 0.0
    %978 = vmatpush1.msra.mxu0 %v946
    %979 = vmatprep.subr.mxu0 0.0
    %980 = vmatpush1.msra.mxu0 %v945
    %981 = vmatprep.subr.mxu0 0.0
    %982 = vmatpush2.msra.mxu0 0.0
    %983 = vmatprep.subr.mxu0 0.0
    %984 = vmatpush2.msra.mxu0 0.0
    %985 = vmatprep.subr.mxu0 0.0
    %986 = vmatpush2.msra.mxu0 0.0
    %987 = vmatprep.subr.mxu0 0.0
    %988 = vmatpush2.msra.mxu0 0.0
    %989 = vmatprep.subr.mxu0 0.0
    %990 = vmatpush2.msra.mxu0 0.0
    %991 = vmatprep.subr.mxu0 0.0
    %992 = vmatpush2.msra.mxu0 0.0
    %993 = vmatprep.subr.mxu0 0.0
    %994 = vmatpush2.msra.mxu0 0.0
    %995 = vmatprep.subr.mxu0 0.0
    %996 = vmatpush2.msra.mxu0 0.0
    %997 = vmatprep.subr.mxu0 0.0
    %998 = vmatpush2.msra.mxu0 0.0
    %999 = vmatprep.subr.mxu0 0.0
    %1000 = vmatpush2.msra.mxu0 0.0
    %1001 = vmatprep.subr.mxu0 0.0
    %1002 = vmatpush2.msra.mxu0 0.0
    %1003 = vmatprep.subr.mxu0 0.0
    %1004 = vmatpush2.msra.mxu0 0.0
    %1005 = vmatprep.subr.mxu0 0.0
    %1006 = vmatpush2.msra.mxu0 0.0
    %1007 = vmatprep.subr.mxu0 0.0
    %1008 = vmatpush2.msra.mxu0 0.0
    %1009 = vmatprep.subr.mxu0 0.0
    %1010 = vmatpush2.msra.mxu0 0.0
    %1011 = vmatprep.subr.mxu0 0.0
    %1012 = vmatpush2.msra.mxu0 0.0
    %1013 = vmatprep.mubr.f32.mxu0 0.0
    %1014 = vmatmul.mubr.f32.gmra.mxu0 %v817
    %v1015 = vpop.f32.mrf.mxu0
    %v1016 = vadd.f32 0.0, %v1015
    %v1017 = vpop.f32.mrf.mxu0
    %1018 = vmatprep.mubr.f32.mxu0 0.0
    %1019 = vmatmul.mubr.f32.gmra.mxu0 %v820
    %v1020 = vpop.f32.mrf.mxu0
    %v1021 = vadd.f32 0.0, %v1020
    %v1022 = vpop.f32.mrf.mxu0
    %1023 = vmatprep.mubr.f32.mxu0 0.0
    %1024 = vmatmul.mubr.f32.gmra.mxu0 %v823
    %v1025 = vpop.f32.mrf.mxu0
    %v1026 = vadd.f32 0.0, %v1025
    %v1027 = vpop.f32.mrf.mxu0
    %1028 = vmatprep.mubr.f32.mxu0 0.0
    %1029 = vmatmul.mubr.f32.gmra.mxu0 %v826
    %v1030 = vpop.f32.mrf.mxu0
    %v1031 = vadd.f32 0.0, %v1030
    %v1032 = vpop.f32.mrf.mxu0
    %1033 = vmatprep.mubr.f32.mxu0 0.0
    %1034 = vmatmul.mubr.f32.gmra.mxu0 %v829
    %v1035 = vpop.f32.mrf.mxu0
    %v1036 = vadd.f32 0.0, %v1035
    %v1037 = vpop.f32.mrf.mxu0
    %1038 = vmatprep.mubr.f32.mxu0 0.0
    %1039 = vmatmul.mubr.f32.gmra.mxu0 %v832
    %v1040 = vpop.f32.mrf.mxu0
    %v1041 = vadd.f32 0.0, %v1040
    %v1042 = vpop.f32.mrf.mxu0
    %1043 = vmatprep.mubr.f32.mxu0 0.0
    %1044 = vmatmul.mubr.f32.gmra.mxu0 %v835
    %v1045 = vpop.f32.mrf.mxu0
    %v1046 = vadd.f32 0.0, %v1045
    %v1047 = vpop.f32.mrf.mxu0
    %1048 = vmatprep.mubr.f32.mxu0 0.0
    %1049 = vmatmul.mubr.f32.gmra.mxu0 %v838
    %v1050 = vpop.f32.mrf.mxu0
    %v1051 = vadd.f32 0.0, %v1050
    %v1052 = vpop.f32.mrf.mxu0
    %1053 = vdwg.mxu0
    %v1054 = vld [vmem:[%s6] sm:$0xff]
    %v1055 = vld [vmem:[%s6 + $0x8] sm:$0xff]
    %v1056 = vld [vmem:[%s6 + $0x10] sm:$0xff]
    %v1057 = vld [vmem:[%s6 + $0x18] sm:$0xff]
    %v1058 = vadd.f32 %v907, %v1046
    %v1059 = vadd.f32 %v912, %v1051
    %v1061 = vsel %vm815, 0.0, 0
    %1063 = vmatprep.subr.mxu0 0.0
    %1064 = vmatpush1.msra.mxu0 0.0
    %1065 = vmatprep.subr.mxu0 0.0
    %1066 = vmatpush1.msra.mxu0 0.0
    %1067 = vmatprep.subr.mxu0 0.0
    %1068 = vmatpush1.msra.mxu0 0.0
    %1069 = vmatprep.subr.mxu0 0.0
    %1070 = vmatpush1.msra.mxu0 0.0
    %1071 = vmatprep.subr.mxu0 0.0
    %1072 = vmatpush1.msra.mxu0 0.0
    %1073 = vmatprep.subr.mxu0 0.0
    %1074 = vmatpush1.msra.mxu0 0.0
    %1075 = vmatprep.subr.mxu0 0.0
    %1076 = vmatpush1.msra.mxu0 0.0
    %1077 = vmatprep.subr.mxu0 0.0
    %1078 = vmatpush1.msra.mxu0 0.0
    %1079 = vmatprep.subr.mxu0 0.0
    %1080 = vmatpush1.msra.mxu0 0.0
    %1081 = vmatprep.subr.mxu0 0.0
    %1082 = vmatpush1.msra.mxu0 0.0
    %1083 = vmatprep.subr.mxu0 0.0
    %1084 = vmatpush1.msra.mxu0 0.0
    %1085 = vmatprep.subr.mxu0 0.0
    %1086 = vmatpush1.msra.mxu0 0.0
    %1087 = vmatprep.subr.mxu0 0.0
    %1088 = vmatpush1.msra.mxu0 %v1057
    %1089 = vmatprep.subr.mxu0 0.0
    %1090 = vmatpush1.msra.mxu0 %v1056
    %1091 = vmatprep.subr.mxu0 0.0
    %1092 = vmatpush1.msra.mxu0 %v1055
    %1093 = vmatprep.subr.mxu0 0.0
    %1094 = vmatpush1.msra.mxu0 %v1054
    %1095 = vmatprep.subr.mxu0 0.0
    %1096 = vmatpush2.msra.mxu0 0.0
    %1097 = vmatprep.subr.mxu0 0.0
    %1098 = vmatpush2.msra.mxu0 0.0
    %1099 = vmatprep.subr.mxu0 0.0
    %1100 = vmatpush2.msra.mxu0 0.0
    %1101 = vmatprep.subr.mxu0 0.0
    %1102 = vmatpush2.msra.mxu0 0.0
    %1103 = vmatprep.subr.mxu0 0.0
    %1104 = vmatpush2.msra.mxu0 0.0
    %1105 = vmatprep.subr.mxu0 0.0
    %1106 = vmatpush2.msra.mxu0 0.0
    %1107 = vmatprep.subr.mxu0 0.0
    %1108 = vmatpush2.msra.mxu0 0.0
    %1109 = vmatprep.subr.mxu0 0.0
    %1110 = vmatpush2.msra.mxu0 0.0
    %1111 = vmatprep.subr.mxu0 0.0
    %1112 = vmatpush2.msra.mxu0 0.0
    %1113 = vmatprep.subr.mxu0 0.0
    %1114 = vmatpush2.msra.mxu0 0.0
    %1115 = vmatprep.subr.mxu0 0.0
    %1116 = vmatpush2.msra.mxu0 0.0
    %1117 = vmatprep.subr.mxu0 0.0
    %1118 = vmatpush2.msra.mxu0 0.0
    %1119 = vmatprep.subr.mxu0 0.0
    %1120 = vmatpush2.msra.mxu0 0.0
    %1121 = vmatprep.subr.mxu0 0.0
    %1122 = vmatpush2.msra.mxu0 0.0
    %1123 = vmatprep.subr.mxu0 0.0
    %1124 = vmatpush2.msra.mxu0 0.0
    %1125 = vmatprep.subr.mxu0 0.0
    %1126 = vmatpush2.msra.mxu0 0.0
    %1127 = vmatprep.mubr.f32.mxu0 0.0
    %1128 = vmatmul.mubr.f32.gmra.mxu0 %v1061
    %v1129 = vpop.f32.mrf.mxu0
    %v1130 = vadd.f32 0.0, %v1129
    %v1131 = vpop.f32.mrf.mxu0
    %1132 = vmatprep.mubr.f32.mxu0 0.0
    %1133 = vmatmul.mubr.f32.gmra.mxu0 %v1061
    %v1134 = vpop.f32.mrf.mxu0
    %v1135 = vadd.f32 0.0, %v1134
    %v1136 = vpop.f32.mrf.mxu0
    %1137 = vdwg.mxu0
    %v1138 = vadd.f32 %v1058, %v1130
    %v1139 = vadd.f32 %v1059, %v1135
    %v1140 = vxor.u32 %v1138, 2147483648
    %v1141 = vxor.u32 %v1139, 2147483648
    %v1142 = vmul.f32 %v1140, 1.442695
    %v1143 = vpow.pop %v1142
    %v1144 = vmul.f32 %v1141, 1.442695
    %v1145 = vpow.pop %v1144
    %v1146 = vadd.f32 %v1143, 1.0
    %v1147 = vadd.f32 %v1145, 1.0
    %v1148 = vrcp.pop %v1146
    %v1149 = vmul.f32 1.0, %v1148
    %v1150 = vrcp.pop %v1147
    %v1151 = vmul.f32 1.0, %v1150
    %v1152 = vtanh.pop %v1138
    %v1153 = vtanh.pop %v1139
    %v1154 = vmul.f32 %v1149, 0.0
    %v1155 = vmul.f32 %v1151, 0.0
    %1158 = vrot.lane.b32.xlu0 %v1152, 64
    %v1159 = vpop.permute.xlu0 %1158
    %1160 = vrot.lane.b32.xlu0 %v1153, 64
    %v1161 = vpop.permute.xlu0 %1160
    %v1164 = vmul.f32 %v1149, %v1159
    %v1165 = vmul.f32 %v1151, %v1161
    %1168 = vrot.lane.b32.xlu0 %v1164, 32
    %v1169 = vpop.permute.xlu0 %1168
    %1170 = vrot.lane.b32.xlu0 %v1165, 32
    %v1171 = vpop.permute.xlu0 %1170
    %v1174 = vadd.f32 %v1154, %v1169
    %v1175 = vadd.f32 %v1155, %v1171
    %v1176 = vtanh.pop %v1174
    %v1177 = vtanh.pop %v1175
    %1180 = vrot.lane.b32.xlu0 %v1176, 64
    %v1181 = vpop.permute.xlu0 %1180
    %1182 = vrot.lane.b32.xlu0 %v1177, 64
    %v1183 = vpop.permute.xlu0 %1182
    %v1186 = vmul.f32 %v1149, %v1181
    %v1187 = vmul.f32 %v1151, %v1183
    %v1188 = vadd.f32 %v917, %v1036
    %v1189 = vadd.f32 %v922, %v1041
    %1192 = vrot.lane.b32.xlu0 %v1186, 32
    %v1193 = vpop.permute.xlu0 %1192
    %1194 = vrot.lane.b32.xlu0 %v1187, 32
    %v1195 = vpop.permute.xlu0 %1194
    %v1196 = vsel %vm815, %v1193, 0
    %v1198 = vsel %vm815, %v1195, 0
    %1200 = vmatprep.subr.mxu0 0.0
    %1201 = vmatpush1.msra.mxu0 0.0
    %1202 = vmatprep.subr.mxu0 0.0
    %1203 = vmatpush1.msra.mxu0 0.0
    %1204 = vmatprep.subr.mxu0 0.0
    %1205 = vmatpush1.msra.mxu0 0.0
    %1206 = vmatprep.subr.mxu0 0.0
    %1207 = vmatpush1.msra.mxu0 0.0
    %1208 = vmatprep.subr.mxu0 0.0
    %1209 = vmatpush1.msra.mxu0 0.0
    %1210 = vmatprep.subr.mxu0 0.0
    %1211 = vmatpush1.msra.mxu0 0.0
    %1212 = vmatprep.subr.mxu0 0.0
    %1213 = vmatpush1.msra.mxu0 0.0
    %1214 = vmatprep.subr.mxu0 0.0
    %1215 = vmatpush1.msra.mxu0 0.0
    %1216 = vmatprep.subr.mxu0 0.0
    %1217 = vmatpush1.msra.mxu0 0.0
    %1218 = vmatprep.subr.mxu0 0.0
    %1219 = vmatpush1.msra.mxu0 0.0
    %1220 = vmatprep.subr.mxu0 0.0
    %1221 = vmatpush1.msra.mxu0 0.0
    %1222 = vmatprep.subr.mxu0 0.0
    %1223 = vmatpush1.msra.mxu0 0.0
    %1224 = vmatprep.subr.mxu0 0.0
    %1225 = vmatpush1.msra.mxu0 %v1057
    %1226 = vmatprep.subr.mxu0 0.0
    %1227 = vmatpush1.msra.mxu0 %v1056
    %1228 = vmatprep.subr.mxu0 0.0
    %1229 = vmatpush1.msra.mxu0 %v1055
    %1230 = vmatprep.subr.mxu0 0.0
    %1231 = vmatpush1.msra.mxu0 %v1054
    %1232 = vmatprep.subr.mxu0 0.0
    %1233 = vmatpush2.msra.mxu0 0.0
    %1234 = vmatprep.subr.mxu0 0.0
    %1235 = vmatpush2.msra.mxu0 0.0
    %1236 = vmatprep.subr.mxu0 0.0
    %1237 = vmatpush2.msra.mxu0 0.0
    %1238 = vmatprep.subr.mxu0 0.0
    %1239 = vmatpush2.msra.mxu0 0.0
    %1240 = vmatprep.subr.mxu0 0.0
    %1241 = vmatpush2.msra.mxu0 0.0
    %1242 = vmatprep.subr.mxu0 0.0
    %1243 = vmatpush2.msra.mxu0 0.0
    %1244 = vmatprep.subr.mxu0 0.0
    %1245 = vmatpush2.msra.mxu0 0.0
    %1246 = vmatprep.subr.mxu0 0.0
    %1247 = vmatpush2.msra.mxu0 0.0
    %1248 = vmatprep.subr.mxu0 0.0
    %1249 = vmatpush2.msra.mxu0 0.0
    %1250 = vmatprep.subr.mxu0 0.0
    %1251 = vmatpush2.msra.mxu0 0.0
    %1252 = vmatprep.subr.mxu0 0.0
    %1253 = vmatpush2.msra.mxu0 0.0
    %1254 = vmatprep.subr.mxu0 0.0
    %1255 = vmatpush2.msra.mxu0 0.0
    %1256 = vmatprep.subr.mxu0 0.0
    %1257 = vmatpush2.msra.mxu0 0.0
    %1258 = vmatprep.subr.mxu0 0.0
    %1259 = vmatpush2.msra.mxu0 0.0
    %1260 = vmatprep.subr.mxu0 0.0
    %1261 = vmatpush2.msra.mxu0 0.0
    %1262 = vmatprep.subr.mxu0 0.0
    %1263 = vmatpush2.msra.mxu0 0.0
    %1264 = vmatprep.mubr.f32.mxu0 0.0
    %1265 = vmatmul.mubr.f32.gmra.mxu0 %v1196
    %v1266 = vpop.f32.mrf.mxu0
    %v1267 = vadd.f32 0.0, %v1266
    %v1268 = vpop.f32.mrf.mxu0
    %1269 = vmatprep.mubr.f32.mxu0 0.0
    %1270 = vmatmul.mubr.f32.gmra.mxu0 %v1198
    %v1271 = vpop.f32.mrf.mxu0
    %v1272 = vadd.f32 0.0, %v1271
    %v1273 = vpop.f32.mrf.mxu0
    %1274 = vdwg.mxu0
    %v1275 = vadd.f32 %v1188, %v1267
    %v1276 = vadd.f32 %v1189, %v1272
    %v1277 = vxor.u32 %v1275, 2147483648
    %v1278 = vxor.u32 %v1276, 2147483648
    %v1279 = vmul.f32 %v1277, 1.442695
    %v1280 = vpow.pop %v1279
    %v1281 = vmul.f32 %v1278, 1.442695
    %v1282 = vpow.pop %v1281
    %v1283 = vadd.f32 %v1280, 1.0
    %v1284 = vadd.f32 %v1282, 1.0
    %v1285 = vrcp.pop %v1283
    %v1286 = vmul.f32 1.0, %v1285
    %v1287 = vrcp.pop %v1284
    %v1288 = vmul.f32 1.0, %v1287
    %v1289 = vtanh.pop %v1275
    %v1290 = vtanh.pop %v1276
    %v1291 = vmul.f32 %v1286, %v1174
    %v1292 = vmul.f32 %v1288, %v1175
    %1295 = vrot.lane.b32.xlu0 %v1289, 64
    %v1296 = vpop.permute.xlu0 %1295
    %1297 = vrot.lane.b32.xlu0 %v1290, 64
    %v1298 = vpop.permute.xlu0 %1297
    %v1301 = vmul.f32 %v1286, %v1296
    %v1302 = vmul.f32 %v1288, %v1298
    %1305 = vrot.lane.b32.xlu0 %v1301, 32
    %v1306 = vpop.permute.xlu0 %1305
    %1307 = vrot.lane.b32.xlu0 %v1302, 32
    %v1308 = vpop.permute.xlu0 %1307
    %v1311 = vadd.f32 %v1291, %v1306
    %v1312 = vadd.f32 %v1292, %v1308
    %v1313 = vtanh.pop %v1311
    %v1314 = vtanh.pop %v1312
    %1317 = vrot.lane.b32.xlu0 %v1313, 64
    %v1318 = vpop.permute.xlu0 %1317
    %1319 = vrot.lane.b32.xlu0 %v1314, 64
    %v1320 = vpop.permute.xlu0 %1319
    %v1323 = vmul.f32 %v1286, %v1318
    %v1324 = vmul.f32 %v1288, %v1320
    %v1325 = vadd.f32 %v927, %v1026
    %v1326 = vadd.f32 %v932, %v1031
    %1329 = vrot.lane.b32.xlu0 %v1323, 32
    %v1330 = vpop.permute.xlu0 %1329
    %1331 = vrot.lane.b32.xlu0 %v1324, 32
    %v1332 = vpop.permute.xlu0 %1331
    %v1333 = vsel %vm815, %v1330, 0
    %v1335 = vsel %vm815, %v1332, 0
    %1337 = vmatprep.subr.mxu0 0.0
    %1338 = vmatpush1.msra.mxu0 0.0
    %1339 = vmatprep.subr.mxu0 0.0
    %1340 = vmatpush1.msra.mxu0 0.0
    %1341 = vmatprep.subr.mxu0 0.0
    %1342 = vmatpush1.msra.mxu0 0.0
    %1343 = vmatprep.subr.mxu0 0.0
    %1344 = vmatpush1.msra.mxu0 0.0
    %1345 = vmatprep.subr.mxu0 0.0
    %1346 = vmatpush1.msra.mxu0 0.0
    %1347 = vmatprep.subr.mxu0 0.0
    %1348 = vmatpush1.msra.mxu0 0.0
    %1349 = vmatprep.subr.mxu0 0.0
    %1350 = vmatpush1.msra.mxu0 0.0
    %1351 = vmatprep.subr.mxu0 0.0
    %1352 = vmatpush1.msra.mxu0 0.0
    %1353 = vmatprep.subr.mxu0 0.0
    %1354 = vmatpush1.msra.mxu0 0.0
    %1355 = vmatprep.subr.mxu0 0.0
    %1356 = vmatpush1.msra.mxu0 0.0
    %1357 = vmatprep.subr.mxu0 0.0
    %1358 = vmatpush1.msra.mxu0 0.0
    %1359 = vmatprep.subr.mxu0 0.0
    %1360 = vmatpush1.msra.mxu0 0.0
    %1361 = vmatprep.subr.mxu0 0.0
    %1362 = vmatpush1.msra.mxu0 %v1057
    %1363 = vmatprep.subr.mxu0 0.0
    %1364 = vmatpush1.msra.mxu0 %v1056
    %1365 = vmatprep.subr.mxu0 0.0
    %1366 = vmatpush1.msra.mxu0 %v1055
    %1367 = vmatprep.subr.mxu0 0.0
    %1368 = vmatpush1.msra.mxu0 %v1054
    %1369 = vmatprep.subr.mxu0 0.0
    %1370 = vmatpush2.msra.mxu0 0.0
    %1371 = vmatprep.subr.mxu0 0.0
    %1372 = vmatpush2.msra.mxu0 0.0
    %1373 = vmatprep.subr.mxu0 0.0
    %1374 = vmatpush2.msra.mxu0 0.0
    %1375 = vmatprep.subr.mxu0 0.0
    %1376 = vmatpush2.msra.mxu0 0.0
    %1377 = vmatprep.subr.mxu0 0.0
    %1378 = vmatpush2.msra.mxu0 0.0
    %1379 = vmatprep.subr.mxu0 0.0
    %1380 = vmatpush2.msra.mxu0 0.0
    %1381 = vmatprep.subr.mxu0 0.0
    %1382 = vmatpush2.msra.mxu0 0.0
    %1383 = vmatprep.subr.mxu0 0.0
    %1384 = vmatpush2.msra.mxu0 0.0
    %1385 = vmatprep.subr.mxu0 0.0
    %1386 = vmatpush2.msra.mxu0 0.0
    %1387 = vmatprep.subr.mxu0 0.0
    %1388 = vmatpush2.msra.mxu0 0.0
    %1389 = vmatprep.subr.mxu0 0.0
    %1390 = vmatpush2.msra.mxu0 0.0
    %1391 = vmatprep.subr.mxu0 0.0
    %1392 = vmatpush2.msra.mxu0 0.0
    %1393 = vmatprep.subr.mxu0 0.0
    %1394 = vmatpush2.msra.mxu0 0.0
    %1395 = vmatprep.subr.mxu0 0.0
    %1396 = vmatpush2.msra.mxu0 0.0
    %1397 = vmatprep.subr.mxu0 0.0
    %1398 = vmatpush2.msra.mxu0 0.0
    %1399 = vmatprep.subr.mxu0 0.0
    %1400 = vmatpush2.msra.mxu0 0.0
    %1401 = vmatprep.mubr.f32.mxu0 0.0
    %1402 = vmatmul.mubr.f32.gmra.mxu0 %v1333
    %v1403 = vpop.f32.mrf.mxu0
    %v1404 = vadd.f32 0.0, %v1403
    %v1405 = vpop.f32.mrf.mxu0
    %1406 = vmatprep.mubr.f32.mxu0 0.0
    %1407 = vmatmul.mubr.f32.gmra.mxu0 %v1335
    %v1408 = vpop.f32.mrf.mxu0
    %v1409 = vadd.f32 0.0, %v1408
    %v1410 = vpop.f32.mrf.mxu0
    %1411 = vdwg.mxu0
    %v1412 = vadd.f32 %v1325, %v1404
    %v1413 = vadd.f32 %v1326, %v1409
    %v1414 = vxor.u32 %v1412, 2147483648
    %v1415 = vxor.u32 %v1413, 2147483648
    %v1416 = vmul.f32 %v1414, 1.442695
    %v1417 = vpow.pop %v1416
    %v1418 = vmul.f32 %v1415, 1.442695
    %v1419 = vpow.pop %v1418
    %v1420 = vadd.f32 %v1417, 1.0
    %v1421 = vadd.f32 %v1419, 1.0
    %v1422 = vrcp.pop %v1420
    %v1423 = vmul.f32 1.0, %v1422
    %v1424 = vrcp.pop %v1421
    %v1425 = vmul.f32 1.0, %v1424
    %v1426 = vtanh.pop %v1412
    %v1427 = vtanh.pop %v1413
    %v1428 = vmul.f32 %v1423, %v1311
    %v1429 = vmul.f32 %v1425, %v1312
    %1432 = vrot.lane.b32.xlu0 %v1426, 64
    %v1433 = vpop.permute.xlu0 %1432
    %1434 = vrot.lane.b32.xlu0 %v1427, 64
    %v1435 = vpop.permute.xlu0 %1434
    %v1438 = vmul.f32 %v1423, %v1433
    %v1439 = vmul.f32 %v1425, %v1435
    %1442 = vrot.lane.b32.xlu0 %v1438, 32
    %v1443 = vpop.permute.xlu0 %1442
    %1444 = vrot.lane.b32.xlu0 %v1439, 32
    %v1445 = vpop.permute.xlu0 %1444
    %v1448 = vadd.f32 %v1428, %v1443
    %v1449 = vadd.f32 %v1429, %v1445
    %v1450 = vtanh.pop %v1448
    %v1451 = vtanh.pop %v1449
    %1454 = vrot.lane.b32.xlu0 %v1450, 64
    %v1455 = vpop.permute.xlu0 %1454
    %1456 = vrot.lane.b32.xlu0 %v1451, 64
    %v1457 = vpop.permute.xlu0 %1456
    %v1460 = vmul.f32 %v1423, %v1455
    %v1461 = vmul.f32 %v1425, %v1457
    %v1462 = vadd.f32 %v937, %v1016
    %v1463 = vadd.f32 %v942, %v1021
    %1466 = vrot.lane.b32.xlu0 %v1460, 32
    %v1467 = vpop.permute.xlu0 %1466
    %1468 = vrot.lane.b32.xlu0 %v1461, 32
    %v1469 = vpop.permute.xlu0 %1468
    %v1470 = vsel %vm815, %v1467, 0
    %v1472 = vsel %vm815, %v1469, 0
    %1474 = vmatprep.subr.mxu0 0.0
    %1475 = vmatpush1.msra.mxu0 0.0
    %1476 = vmatprep.subr.mxu0 0.0
    %1477 = vmatpush1.msra.mxu0 0.0
    %1478 = vmatprep.subr.mxu0 0.0
    %1479 = vmatpush1.msra.mxu0 0.0
    %1480 = vmatprep.subr.mxu0 0.0
    %1481 = vmatpush1.msra.mxu0 0.0
    %1482 = vmatprep.subr.mxu0 0.0
    %1483 = vmatpush1.msra.mxu0 0.0
    %1484 = vmatprep.subr.mxu0 0.0
    %1485 = vmatpush1.msra.mxu0 0.0
    %1486 = vmatprep.subr.mxu0 0.0
    %1487 = vmatpush1.msra.mxu0 0.0
    %1488 = vmatprep.subr.mxu0 0.0
    %1489 = vmatpush1.msra.mxu0 0.0
    %1490 = vmatprep.subr.mxu0 0.0
    %1491 = vmatpush1.msra.mxu0 0.0
    %1492 = vmatprep.subr.mxu0 0.0
    %1493 = vmatpush1.msra.mxu0 0.0
    %1494 = vmatprep.subr.mxu0 0.0
    %1495 = vmatpush1.msra.mxu0 0.0
    %1496 = vmatprep.subr.mxu0 0.0
    %1497 = vmatpush1.msra.mxu0 0.0
    %1498 = vmatprep.subr.mxu0 0.0
    %1499 = vmatpush1.msra.mxu0 %v1057
    %1500 = vmatprep.subr.mxu0 0.0
    %1501 = vmatpush1.msra.mxu0 %v1056
    %1502 = vmatprep.subr.mxu0 0.0
    %1503 = vmatpush1.msra.mxu0 %v1055
    %1504 = vmatprep.subr.mxu0 0.0
    %1505 = vmatpush1.msra.mxu0 %v1054
    %1506 = vmatprep.subr.mxu0 0.0
    %1507 = vmatpush2.msra.mxu0 0.0
    %1508 = vmatprep.subr.mxu0 0.0
    %1509 = vmatpush2.msra.mxu0 0.0
    %1510 = vmatprep.subr.mxu0 0.0
    %1511 = vmatpush2.msra.mxu0 0.0
    %1512 = vmatprep.subr.mxu0 0.0
    %1513 = vmatpush2.msra.mxu0 0.0
    %1514 = vmatprep.subr.mxu0 0.0
    %1515 = vmatpush2.msra.mxu0 0.0
    %1516 = vmatprep.subr.mxu0 0.0
    %1517 = vmatpush2.msra.mxu0 0.0
    %1518 = vmatprep.subr.mxu0 0.0
    %1519 = vmatpush2.msra.mxu0 0.0
    %1520 = vmatprep.subr.mxu0 0.0
    %1521 = vmatpush2.msra.mxu0 0.0
    %1522 = vmatprep.subr.mxu0 0.0
    %1523 = vmatpush2.msra.mxu0 0.0
    %1524 = vmatprep.subr.mxu0 0.0
    %1525 = vmatpush2.msra.mxu0 0.0
    %1526 = vmatprep.subr.mxu0 0.0
    %1527 = vmatpush2.msra.mxu0 0.0
    %1528 = vmatprep.subr.mxu0 0.0
    %1529 = vmatpush2.msra.mxu0 0.0
    %1530 = vmatprep.subr.mxu0 0.0
    %1531 = vmatpush2.msra.mxu0 0.0
    %1532 = vmatprep.subr.mxu0 0.0
    %1533 = vmatpush2.msra.mxu0 0.0
    %1534 = vmatprep.subr.mxu0 0.0
    %1535 = vmatpush2.msra.mxu0 0.0
    %1536 = vmatprep.subr.mxu0 0.0
    %1537 = vmatpush2.msra.mxu0 0.0
    %1538 = vmatprep.mubr.f32.mxu0 0.0
    %1539 = vmatmul.mubr.f32.gmra.mxu0 %v1470
    %v1540 = vpop.f32.mrf.mxu0
    %v1541 = vadd.f32 0.0, %v1540
    %v1542 = vpop.f32.mrf.mxu0
    %1543 = vmatprep.mubr.f32.mxu0 0.0
    %1544 = vmatmul.mubr.f32.gmra.mxu0 %v1472
    %v1545 = vpop.f32.mrf.mxu0
    %v1546 = vadd.f32 0.0, %v1545
    %v1547 = vpop.f32.mrf.mxu0
    %1548 = vdwg.mxu0
    %v1549 = vadd.f32 %v1462, %v1541
    %v1550 = vadd.f32 %v1463, %v1546
    %v1551 = vxor.u32 %v1549, 2147483648
    %v1552 = vxor.u32 %v1550, 2147483648
    %v1553 = vmul.f32 %v1551, 1.442695
    %v1554 = vpow.pop %v1553
    %v1555 = vmul.f32 %v1552, 1.442695
    %v1556 = vpow.pop %v1555
    %v1557 = vadd.f32 %v1554, 1.0
    %v1558 = vadd.f32 %v1556, 1.0
    %v1559 = vrcp.pop %v1557
    %v1560 = vmul.f32 1.0, %v1559
    %v1561 = vrcp.pop %v1558
    %v1562 = vmul.f32 1.0, %v1561
    %v1563 = vtanh.pop %v1549
    %v1564 = vtanh.pop %v1550
    %v1565 = vmul.f32 %v1560, %v1448
    %v1566 = vmul.f32 %v1562, %v1449
    %1569 = vrot.lane.b32.xlu0 %v1563, 64
    %v1570 = vpop.permute.xlu0 %1569
    %1571 = vrot.lane.b32.xlu0 %v1564, 64
    %v1572 = vpop.permute.xlu0 %1571
    %v1575 = vmul.f32 %v1560, %v1570
    %v1576 = vmul.f32 %v1562, %v1572
    %1579 = vrot.lane.b32.xlu0 %v1575, 32
    %v1580 = vpop.permute.xlu0 %1579
    %1581 = vrot.lane.b32.xlu0 %v1576, 32
    %v1582 = vpop.permute.xlu0 %1581
    %v1585 = vadd.f32 %v1565, %v1580
    %v1586 = vadd.f32 %v1566, %v1582
    %v1587 = vtanh.pop %v1585
    %v1588 = vtanh.pop %v1586
    %1591 = vrot.lane.b32.xlu0 %v1587, 64
    %v1592 = vpop.permute.xlu0 %1591
    %1593 = vrot.lane.b32.xlu0 %v1588, 64
    %v1594 = vpop.permute.xlu0 %1593
    %v1597 = vmul.f32 %v1560, %v1592
    %v1598 = vmul.f32 %v1562, %v1594
    %v1599 = vld [vmem:[%s9] sm:$0x1]
    %v1601 = vlaneseq
    %v1602 = vshrl.u32 %v1601, 7
    %v1603 = vsub.s32 0, %v1602
    %v1604 = vrot.slane %v1599, %v1603
    %v1606 = vadd.f32 %v1604, 0.0
    %v1607 = vld [vmem:[%s8] sm:$0xff]
    %v1608 = vld [vmem:[%s8 + $0x8] sm:$0xff]
    %v1609 = vld [vmem:[%s8 + $0x10] sm:$0xff]
    %v1610 = vld [vmem:[%s8 + $0x18] sm:$0xff]
    %1613 = vrot.lane.b32.xlu0 %v1597, 32
    %v1614 = vpop.permute.xlu0 %1613
    %1615 = vrot.lane.b32.xlu0 %v1598, 32
    %v1616 = vpop.permute.xlu0 %1615
    %v1617 = vsel %vm815, %v1614, 0
    %v1619 = vsel %vm815, %v1616, 0
    %1621 = vmatprep.subr.mxu0 0.0
    %1622 = vmatpush1.msra.mxu0 0.0
    %1623 = vmatprep.subr.mxu0 0.0
    %1624 = vmatpush1.msra.mxu0 0.0
    %1625 = vmatprep.subr.mxu0 0.0
    %1626 = vmatpush1.msra.mxu0 0.0
    %1627 = vmatprep.subr.mxu0 0.0
    %1628 = vmatpush1.msra.mxu0 0.0
    %1629 = vmatprep.subr.mxu0 0.0
    %1630 = vmatpush1.msra.mxu0 0.0
    %1631 = vmatprep.subr.mxu0 0.0
    %1632 = vmatpush1.msra.mxu0 0.0
    %1633 = vmatprep.subr.mxu0 0.0
    %1634 = vmatpush1.msra.mxu0 0.0
    %1635 = vmatprep.subr.mxu0 0.0
    %1636 = vmatpush1.msra.mxu0 0.0
    %1637 = vmatprep.subr.mxu0 0.0
    %1638 = vmatpush1.msra.mxu0 0.0
    %1639 = vmatprep.subr.mxu0 0.0
    %1640 = vmatpush1.msra.mxu0 0.0
    %1641 = vmatprep.subr.mxu0 0.0
    %1642 = vmatpush1.msra.mxu0 0.0
    %1643 = vmatprep.subr.mxu0 0.0
    %1644 = vmatpush1.msra.mxu0 0.0
    %1645 = vmatprep.subr.mxu0 0.0
    %1646 = vmatpush1.msra.mxu0 %v1610
    %1647 = vmatprep.subr.mxu0 0.0
    %1648 = vmatpush1.msra.mxu0 %v1609
    %1649 = vmatprep.subr.mxu0 0.0
    %1650 = vmatpush1.msra.mxu0 %v1608
    %1651 = vmatprep.subr.mxu0 0.0
    %1652 = vmatpush1.msra.mxu0 %v1607
    %1653 = vmatprep.subr.mxu0 0.0
    %1654 = vmatpush2.msra.mxu0 0.0
    %1655 = vmatprep.subr.mxu0 0.0
    %1656 = vmatpush2.msra.mxu0 0.0
    %1657 = vmatprep.subr.mxu0 0.0
    %1658 = vmatpush2.msra.mxu0 0.0
    %1659 = vmatprep.subr.mxu0 0.0
    %1660 = vmatpush2.msra.mxu0 0.0
    %1661 = vmatprep.subr.mxu0 0.0
    %1662 = vmatpush2.msra.mxu0 0.0
    %1663 = vmatprep.subr.mxu0 0.0
    %1664 = vmatpush2.msra.mxu0 0.0
    %1665 = vmatprep.subr.mxu0 0.0
    %1666 = vmatpush2.msra.mxu0 0.0
    %1667 = vmatprep.subr.mxu0 0.0
    %1668 = vmatpush2.msra.mxu0 0.0
    %1669 = vmatprep.subr.mxu0 0.0
    %1670 = vmatpush2.msra.mxu0 0.0
    %1671 = vmatprep.subr.mxu0 0.0
    %1672 = vmatpush2.msra.mxu0 0.0
    %1673 = vmatprep.subr.mxu0 0.0
    %1674 = vmatpush2.msra.mxu0 0.0
    %1675 = vmatprep.subr.mxu0 0.0
    %1676 = vmatpush2.msra.mxu0 0.0
    %1677 = vmatprep.subr.mxu0 0.0
    %1678 = vmatpush2.msra.mxu0 0.0
    %1679 = vmatprep.subr.mxu0 0.0
    %1680 = vmatpush2.msra.mxu0 0.0
    %1681 = vmatprep.subr.mxu0 0.0
    %1682 = vmatpush2.msra.mxu0 0.0
    %1683 = vmatprep.subr.mxu0 0.0
    %1684 = vmatpush2.msra.mxu0 0.0
    %1685 = vmatprep.mubr.f32.mxu0 0.0
    %1686 = vmatmul.mubr.f32.gmra.mxu0 %v1617
    %v1687 = vpop.f32.mrf.mxu0
    %v1688 = vadd.f32 0.0, %v1687
    %v1689 = vpop.f32.mrf.mxu0
    %1690 = vmatprep.mubr.f32.mxu0 0.0
    %1691 = vmatmul.mubr.f32.gmra.mxu0 %v1619
    %v1692 = vpop.f32.mrf.mxu0
    %v1693 = vadd.f32 0.0, %v1692
    %v1694 = vpop.f32.mrf.mxu0
    %1695 = vdwg.mxu0
    %v1696 = vadd.f32 %v1606, %v1688
    %v1697 = vadd.f32 %v1606, %v1693
    %s1698 = scalar_lea.vmem %s8, 32
    %v1699 = vld [vmem:[%s1698] sm:$0xff]
    %v1700 = vld [vmem:[%s1698 + $0x8] sm:$0xff]
    %v1701 = vld [vmem:[%s1698 + $0x10] sm:$0xff]
    %v1702 = vld [vmem:[%s1698 + $0x18] sm:$0xff]
    %vm1703 = vcmask 1046528
    %v1704 = vrot.slane %v1597, 1
    %v1705 = vrot.slane %v1598, 1
    %v1706 = vsel %vm1703, %v1704, %v1705
    %1707 = vrot.lane.b32.xlu0 %v1706, 32
    %v1708 = vpop.permute.xlu0 %1707
    %1709 = vrot.lane.b32.xlu0 %v1705, 32
    %v1710 = vpop.permute.xlu0 %1709
    %v1711 = vsel %vm815, %v1708, 0
    %v1713 = vsel %vm815, %v1710, 0
    %1715 = vmatprep.subr.mxu0 0.0
    %1716 = vmatpush1.msra.mxu0 0.0
    %1717 = vmatprep.subr.mxu0 0.0
    %1718 = vmatpush1.msra.mxu0 0.0
    %1719 = vmatprep.subr.mxu0 0.0
    %1720 = vmatpush1.msra.mxu0 0.0
    %1721 = vmatprep.subr.mxu0 0.0
    %1722 = vmatpush1.msra.mxu0 0.0
    %1723 = vmatprep.subr.mxu0 0.0
    %1724 = vmatpush1.msra.mxu0 0.0
    %1725 = vmatprep.subr.mxu0 0.0
    %1726 = vmatpush1.msra.mxu0 0.0
    %1727 = vmatprep.subr.mxu0 0.0
    %1728 = vmatpush1.msra.mxu0 0.0
    %1729 = vmatprep.subr.mxu0 0.0
    %1730 = vmatpush1.msra.mxu0 0.0
    %1731 = vmatprep.subr.mxu0 0.0
    %1732 = vmatpush1.msra.mxu0 0.0
    %1733 = vmatprep.subr.mxu0 0.0
    %1734 = vmatpush1.msra.mxu0 0.0
    %1735 = vmatprep.subr.mxu0 0.0
    %1736 = vmatpush1.msra.mxu0 0.0
    %1737 = vmatprep.subr.mxu0 0.0
    %1738 = vmatpush1.msra.mxu0 0.0
    %1739 = vmatprep.subr.mxu0 0.0
    %1740 = vmatpush1.msra.mxu0 %v1702
    %1741 = vmatprep.subr.mxu0 0.0
    %1742 = vmatpush1.msra.mxu0 %v1701
    %1743 = vmatprep.subr.mxu0 0.0
    %1744 = vmatpush1.msra.mxu0 %v1700
    %1745 = vmatprep.subr.mxu0 0.0
    %1746 = vmatpush1.msra.mxu0 %v1699
    %1747 = vmatprep.subr.mxu0 0.0
    %1748 = vmatpush2.msra.mxu0 0.0
    %1749 = vmatprep.subr.mxu0 0.0
    %1750 = vmatpush2.msra.mxu0 0.0
    %1751 = vmatprep.subr.mxu0 0.0
    %1752 = vmatpush2.msra.mxu0 0.0
    %1753 = vmatprep.subr.mxu0 0.0
    %1754 = vmatpush2.msra.mxu0 0.0
    %1755 = vmatprep.subr.mxu0 0.0
    %1756 = vmatpush2.msra.mxu0 0.0
    %1757 = vmatprep.subr.mxu0 0.0
    %1758 = vmatpush2.msra.mxu0 0.0
    %1759 = vmatprep.subr.mxu0 0.0
    %1760 = vmatpush2.msra.mxu0 0.0
    %1761 = vmatprep.subr.mxu0 0.0
    %1762 = vmatpush2.msra.mxu0 0.0
    %1763 = vmatprep.subr.mxu0 0.0
    %1764 = vmatpush2.msra.mxu0 0.0
    %1765 = vmatprep.subr.mxu0 0.0
    %1766 = vmatpush2.msra.mxu0 0.0
    %1767 = vmatprep.subr.mxu0 0.0
    %1768 = vmatpush2.msra.mxu0 0.0
    %1769 = vmatprep.subr.mxu0 0.0
    %1770 = vmatpush2.msra.mxu0 0.0
    %1771 = vmatprep.subr.mxu0 0.0
    %1772 = vmatpush2.msra.mxu0 0.0
    %1773 = vmatprep.subr.mxu0 0.0
    %1774 = vmatpush2.msra.mxu0 0.0
    %1775 = vmatprep.subr.mxu0 0.0
    %1776 = vmatpush2.msra.mxu0 0.0
    %1777 = vmatprep.subr.mxu0 0.0
    %1778 = vmatpush2.msra.mxu0 0.0
    %1779 = vmatprep.mubr.f32.mxu0 0.0
    %1780 = vmatmul.mubr.f32.gmra.mxu0 %v1711
    %v1781 = vpop.f32.mrf.mxu0
    %v1782 = vadd.f32 0.0, %v1781
    %v1783 = vpop.f32.mrf.mxu0
    %1784 = vmatprep.mubr.f32.mxu0 0.0
    %1785 = vmatmul.mubr.f32.gmra.mxu0 %v1713
    %v1786 = vpop.f32.mrf.mxu0
    %v1787 = vadd.f32 0.0, %v1786
    %v1788 = vpop.f32.mrf.mxu0
    %1789 = vdwg.mxu0
    %v1790 = vadd.f32 %v1696, %v1782
    %v1791 = vadd.f32 %v1697, %v1787
    %s1792 = scalar_lea.vmem %s8, 64
    %v1793 = vld [vmem:[%s1792] sm:$0xff]
    %v1794 = vld [vmem:[%s1792 + $0x8] sm:$0xff]
    %v1795 = vld [vmem:[%s1792 + $0x10] sm:$0xff]
    %v1796 = vld [vmem:[%s1792 + $0x18] sm:$0xff]
    %vm1797 = vcmask 1045504
    %v1798 = vrot.slane %v1597, 2
    %v1799 = vrot.slane %v1598, 2
    %v1800 = vsel %vm1797, %v1798, %v1799
    %1801 = vrot.lane.b32.xlu0 %v1800, 32
    %v1802 = vpop.permute.xlu0 %1801
    %1803 = vrot.lane.b32.xlu0 %v1799, 32
    %v1804 = vpop.permute.xlu0 %1803
    %v1805 = vsel %vm815, %v1802, 0
    %v1807 = vsel %vm815, %v1804, 0
    %1809 = vmatprep.subr.mxu0 0.0
    %1810 = vmatpush1.msra.mxu0 0.0
    %1811 = vmatprep.subr.mxu0 0.0
    %1812 = vmatpush1.msra.mxu0 0.0
    %1813 = vmatprep.subr.mxu0 0.0
    %1814 = vmatpush1.msra.mxu0 0.0
    %1815 = vmatprep.subr.mxu0 0.0
    %1816 = vmatpush1.msra.mxu0 0.0
    %1817 = vmatprep.subr.mxu0 0.0
    %1818 = vmatpush1.msra.mxu0 0.0
    %1819 = vmatprep.subr.mxu0 0.0
    %1820 = vmatpush1.msra.mxu0 0.0
    %1821 = vmatprep.subr.mxu0 0.0
    %1822 = vmatpush1.msra.mxu0 0.0
    %1823 = vmatprep.subr.mxu0 0.0
    %1824 = vmatpush1.msra.mxu0 0.0
    %1825 = vmatprep.subr.mxu0 0.0
    %1826 = vmatpush1.msra.mxu0 0.0
    %1827 = vmatprep.subr.mxu0 0.0
    %1828 = vmatpush1.msra.mxu0 0.0
    %1829 = vmatprep.subr.mxu0 0.0
    %1830 = vmatpush1.msra.mxu0 0.0
    %1831 = vmatprep.subr.mxu0 0.0
    %1832 = vmatpush1.msra.mxu0 0.0
    %1833 = vmatprep.subr.mxu0 0.0
    %1834 = vmatpush1.msra.mxu0 %v1796
    %1835 = vmatprep.subr.mxu0 0.0
    %1836 = vmatpush1.msra.mxu0 %v1795
    %1837 = vmatprep.subr.mxu0 0.0
    %1838 = vmatpush1.msra.mxu0 %v1794
    %1839 = vmatprep.subr.mxu0 0.0
    %1840 = vmatpush1.msra.mxu0 %v1793
    %1841 = vmatprep.subr.mxu0 0.0
    %1842 = vmatpush2.msra.mxu0 0.0
    %1843 = vmatprep.subr.mxu0 0.0
    %1844 = vmatpush2.msra.mxu0 0.0
    %1845 = vmatprep.subr.mxu0 0.0
    %1846 = vmatpush2.msra.mxu0 0.0
    %1847 = vmatprep.subr.mxu0 0.0
    %1848 = vmatpush2.msra.mxu0 0.0
    %1849 = vmatprep.subr.mxu0 0.0
    %1850 = vmatpush2.msra.mxu0 0.0
    %1851 = vmatprep.subr.mxu0 0.0
    %1852 = vmatpush2.msra.mxu0 0.0
    %1853 = vmatprep.subr.mxu0 0.0
    %1854 = vmatpush2.msra.mxu0 0.0
    %1855 = vmatprep.subr.mxu0 0.0
    %1856 = vmatpush2.msra.mxu0 0.0
    %1857 = vmatprep.subr.mxu0 0.0
    %1858 = vmatpush2.msra.mxu0 0.0
    %1859 = vmatprep.subr.mxu0 0.0
    %1860 = vmatpush2.msra.mxu0 0.0
    %1861 = vmatprep.subr.mxu0 0.0
    %1862 = vmatpush2.msra.mxu0 0.0
    %1863 = vmatprep.subr.mxu0 0.0
    %1864 = vmatpush2.msra.mxu0 0.0
    %1865 = vmatprep.subr.mxu0 0.0
    %1866 = vmatpush2.msra.mxu0 0.0
    %1867 = vmatprep.subr.mxu0 0.0
    %1868 = vmatpush2.msra.mxu0 0.0
    %1869 = vmatprep.subr.mxu0 0.0
    %1870 = vmatpush2.msra.mxu0 0.0
    %1871 = vmatprep.subr.mxu0 0.0
    %1872 = vmatpush2.msra.mxu0 0.0
    %1873 = vmatprep.mubr.f32.mxu0 0.0
    %1874 = vmatmul.mubr.f32.gmra.mxu0 %v1805
    %v1875 = vpop.f32.mrf.mxu0
    %v1876 = vadd.f32 0.0, %v1875
    %v1877 = vpop.f32.mrf.mxu0
    %1878 = vmatprep.mubr.f32.mxu0 0.0
    %1879 = vmatmul.mubr.f32.gmra.mxu0 %v1807
    %v1880 = vpop.f32.mrf.mxu0
    %v1881 = vadd.f32 0.0, %v1880
    %v1882 = vpop.f32.mrf.mxu0
    %1883 = vdwg.mxu0
    %v1884 = vadd.f32 %v1790, %v1876
    %v1885 = vadd.f32 %v1791, %v1881
    %v1886 = vld [vmem:[%s10] sm:$0xff]
    %v1887 = vld [vmem:[%s10 + $0x8] sm:$0x3f]
    %1889 = vset.pattern.permute.xlu0 0
    %1890 = vperm.xlu0 %1889, %v1886
    %v1891 = vpop.permute.xlu0 %1890
    %1894 = vset.pattern.permute.xlu0 0
    %1895 = vperm.xlu0 %1894, %v1887
    %v1896 = vpop.permute.xlu0 %1895
    %v1898 = vadd.f32 %v1884, %v1891
    %v1899 = vadd.f32 %v1885, %v1896
    %vm1900 = vcmask 259072
    %v1901 = vsel %vm1900, %v1898, -inf
    %v1902 = vrot.slane %v1901, 4
    %v1903 = vmax.f32 %v1901, %v1902
    %v1904 = vrot.slane %v1903, 2
    %v1905 = vmax.f32 %v1903, %v1904
    %v1906 = vrot.slane %v1905, 1
    %v1907 = vmax.f32 %v1905, %v1906
    %v1908 = vsel %vm1900, %v1899, -inf
    %v1909 = vrot.slane %v1908, 4
    %v1910 = vmax.f32 %v1908, %v1909
    %v1911 = vrot.slane %v1910, 2
    %v1912 = vmax.f32 %v1910, %v1911
    %v1913 = vrot.slane %v1912, 1
    %v1914 = vmax.f32 %v1912, %v1913
    %vm1915 = vcmask 1040384
    %v1916 = vsel %vm1915, %v1907, %v1914
    %vm1917 = vcmask 254976
    %1918 = vst.msk [vmem:[#allocation2] sm:$0x3] %vm1917, %v1916
    // Predicated region
    $region46: #{entity_embedding_forward.1} parent=1 // pred_check
      _
    $region47: #{entity_embedding_forward.1} parent=1 // pred_check_branch
      %1920 = sbr.rel (0) target = $region49
    $region48: #{entity_embedding_forward.1} parent=1 // pred_region
      %s1922 = ssub.s32 32, 32
      %1923 = vsyncadd [#allocation3], %s1922
      %s1925 = sshll.u32 [#allocation2], 4
      %s1926 = int_to_ptr.vmem [resolvable:$true] %s1925
      %1928 = dma.vmem_to_hbm [thread:$0]  %s1926, 32, %s11, [#allocation3]
    $region49: #{entity_embedding_forward.1} parent=1 // pred_fallthru
      _
    // Predicated region
    $region50: #{entity_embedding_forward.1} parent=1 // pred_check
      _
    $region51: #{entity_embedding_forward.1} parent=1 // pred_check_branch
      %1930 = sbr.rel (0) target = $region53
    $region52: #{entity_embedding_forward.1} parent=1 // pred_region
      %1931 = dma.done [#allocation3], 32
    $region53: #{entity_embedding_forward.1} parent=1 // pred_fallthru
      _
    %1932 = vsyncpa [#allocation3], 1

</llo_original>
